<compile_context>
chip_gen: v7x
topology: tpu7x:2x2x1
jax: 0.10.0
libtpu: 0.0.40
codegen_flags: <defaults>
</compile_context>

<pallas_src>
import numpy as np
import jax
import jax.numpy as jnp
from jax import lax
from jax.experimental import pallas as pl
from jax.experimental.pallas import tpu as pltpu


# ----------------------------------------------------------------------------
# Pallas kernel
# ----------------------------------------------------------------------------
def dsc_kernel(x_ref, wd_ref, wpt_ref, bf_ref, out_ref):
    # x_ref  : (nb, H+2p, W+2p, C)   host-padded NHWC input block
    # wd_ref : (k*k, 1, C)           depthwise weights, tap-major
    # wpt_ref: (Co, C)               pointwise weights, pre-transposed on host
    # bf_ref : (Co, 1)               fused bias column  (bp + bd @ wp)
    # out_ref: (nb, Co, H*W)         lane-dense NC(HW) output block
    nb, Co, HW = out_ref.shape
    _, Hp, Wp, C = x_ref.shape
    kk = wd_ref.shape[0]
    k = int(round(kk ** 0.5))
    H = Hp - (k - 1)
    W = Wp - (k - 1)

    xb = x_ref[...]                                    # one VMEM load, slice values
    wd = wd_ref[...]                                   # (kk, 1, C)
    wpt = wpt_ref[...]                                 # (Co, C)
    bias = bf_ref[...]                                 # (Co, 1)

    # ---- depthwise kxk conv: k shifted copies (dx-outer), k*k VPU FMAs ------
    acc = None
    for dx in range(k):                                # sublane (XLU) shift, k copies
        cols = xb[:, :, dx:dx + W, :]                  # (nb, Hp, W, C)
        for dy in range(k):                            # leading-dim slice, free
            win = cols[:, dy:dy + H, :, :]             # (nb, H, W, C)
            tap = wd[dy * k + dx].reshape(1, 1, 1, C)  # broadcast over lanes
            term = win * tap
            acc = term if acc is None else acc + term

    # ---- pointwise 1x1 conv: one MXU matmul over all nb*H*W pixels ----------
    # 'oc,pc->op' (A @ B^T form) so the result is (Co, nb*H*W): lane-dense
    # stores and an output that is already NCHW up to a host reshape.
    acc2 = acc.reshape(nb * H * W, C)                  # major-dim merge (free, W % 8 == 0)
    y = lax.dot_general(wpt, acc2, (((1,), (1,)), ((), ())),
                        preferred_element_type=jnp.float32) + bias   # (Co, nb*H*W)

    for b in range(nb):                                # static unroll; 128-aligned lane slices
        out_ref[b] = y[:, b * HW:(b + 1) * HW].astype(out_ref.dtype)


# ----------------------------------------------------------------------------
# Wrapper
# ----------------------------------------------------------------------------
def dsc_pallas(x_nchw, params, *, batch_block=None):
    """x_nchw: (N, C_in, H, W) -> (N, C_out, H, W)."""
    N, C, H, W = x_nchw.shape
    wd = params["wd"]                    # (k*k, 1, C)
    wpt = params["wpt"]                  # (Co, C)   = wp.T
    bf = params["b_fused"]               # (Co, 1)
    kk = wd.shape[0]
    k = int(round(kk ** 0.5))
    p = (k - 1) // 2
    Co = wpt.shape[0]

    if batch_block is None:
        # One image per grid step: maximises grid steps for input-DMA
        # pipelining and "parallel" megacore sharding; raise for large batches
        # of tiny images to amortise the ~0.35 us per-step overhead.
        batch_block = 1
    assert N % batch_block == 0, "batch_block must divide N"
    nb = batch_block

    x = jnp.transpose(x_nchw, (0, 2, 3, 1)).astype(jnp.float32)    # NHWC
    xpad = jnp.pad(x, ((0, 0), (p, p), (p, p), (0, 0)))            # host "same" pad

    out = pl.pallas_call(
        dsc_kernel,
        out_shape=jax.ShapeDtypeStruct((N, Co, H * W), jnp.float32),
        grid_spec=pltpu.PrefetchScalarGridSpec(
            num_scalar_prefetch=0,
            grid=(N // nb,),
            in_specs=[
                pl.BlockSpec((nb, H + 2 * p, W + 2 * p, C),
                             lambda n: (n, 0, 0, 0)),
                pl.BlockSpec(wd.shape, lambda n: (0, 0, 0)),
                pl.BlockSpec(wpt.shape, lambda n: (0, 0)),
                pl.BlockSpec(bf.shape, lambda n: (0, 0)),
            ],
            out_specs=pl.BlockSpec((nb, Co, H * W), lambda n: (n, 0, 0)),
        ),
        compiler_params=pltpu.CompilerParams(
            dimension_semantics=("parallel",)),
    )(xpad, wd, wpt, bf)

    # (N, Co, H*W) is already channel-major; the reshape back to NCHW is free.
    return out.reshape(N, Co, H, W)


# ----------------------------------------------------------------------------
# Parameter construction (deterministic)
# ----------------------------------------------------------------------------
def build_params(key, c_in, c_out, kernel_size=3):
    kk = kernel_size * kernel_size
    k1, k2, k3, k4 = jax.random.split(key, 4)
    wd = jax.random.normal(k1, (kk, 1, c_in), jnp.float32) * 0.3   # depthwise
    bd = jax.random.normal(k2, (c_in,), jnp.float32) * 0.1
    wp = jax.random.normal(k3, (c_in, c_out), jnp.float32) / np.sqrt(c_in)
    bp = jax.random.normal(k4, (c_out,), jnp.float32) * 0.1
    # Fold the depthwise bias into the pointwise bias (composition is linear):
    #   (dw + bd) @ wp + bp  ==  dw @ wp + (bd @ wp + bp)
    b_fused = (bp + bd @ wp).reshape(c_out, 1)
    params = {"wd": wd, "wpt": jnp.asarray(wp.T), "b_fused": b_fused}
    ref = {"wd": wd, "bd": bd, "wp": wp, "bp": bp, "k": kernel_size}
    return params, ref


# ----------------------------------------------------------------------------
# Pure-JAX reference (lax.conv) for verification
# ----------------------------------------------------------------------------
def reference(x_nchw, ref):
    x = jnp.transpose(x_nchw, (0, 2, 3, 1)).astype(jnp.float32)    # NHWC
    C = x.shape[-1]
    k = ref["k"]
    Co = ref["wp"].shape[1]

    # depthwise conv (groups = C)
    y = lax.conv_general_dilated(
        x, ref["wd"].reshape(k, k, 1, C),
        window_strides=(1, 1), padding="SAME",
        dimension_numbers=("NHWC", "HWIO", "NHWC"),
        feature_group_count=C, precision=lax.Precision.HIGHEST)
    y = y + ref["bd"][None, None, None, :]

    # pointwise 1x1 conv
    z = lax.conv_general_dilated(
        y, ref["wp"].reshape(1, 1, C, Co),
        window_strides=(1, 1), padding="SAME",
        dimension_numbers=("NHWC", "HWIO", "NHWC"),
        precision=lax.Precision.HIGHEST)
    z = z + ref["bp"][None, None, None, :]
    return jnp.transpose(z, (0, 3, 1, 2))


# ----------------------------------------------------------------------------
if __name__ == "__main__":
    N, Cin, Cout, H, W, ksize = 2, 4, 8, 16, 16, 3

    key = jax.random.PRNGKey(0)
    kx, kp = jax.random.split(key)
    x = jax.random.normal(kx, (N, Cin, H, W), jnp.float32)         # NCHW

    params, ref_params = build_params(kp, Cin, Cout, ksize)

    out = jax.block_until_ready(dsc_pallas(x, params))
    ref = jax.block_until_ready(reference(x, ref_params))

    assert out.shape == (N, Cout, H, W)
    np.testing.assert_allclose(np.asarray(out), np.asarray(ref),
                               rtol=1e-4, atol=1e-4)
    print("KERNEL_OK")
</pallas_src>

<mosaic_0001>
module attributes {stable_mosaic.version = 11 : i64} {
  func.func @dsc_kernel(%arg0: i32, %arg1: memref<1x18x18x4xf32, #tpu.memory_space<vmem>>, %arg2: memref<9x1x4xf32, #tpu.memory_space<vmem>>, %arg3: memref<8x4xf32, #tpu.memory_space<vmem>>, %arg4: memref<8x1xf32, #tpu.memory_space<vmem>>, %arg5: memref<1x8x256xf32, #tpu.memory_space<vmem>>) attributes {dimension_semantics = [#tpu.dimension_semantics<parallel>], iteration_bounds = array<i64: 2>, scalar_prefetch = 0 : i64, scratch_operands = 0 : i64, tpu.core_type = #tpu.core_type<tc>, window_params = [{transform_indices = @transform_0, window_bounds = array<i64: 1, 18, 18, 4>}, {pipeline_mode = #tpu.pipeline_mode<synchronous>, transform_indices = @transform_1, window_bounds = array<i64: 9, 1, 4>}, {pipeline_mode = #tpu.pipeline_mode<synchronous>, transform_indices = @transform_2, window_bounds = array<i64: 8, 4>}, {pipeline_mode = #tpu.pipeline_mode<synchronous>, transform_indices = @transform_3, window_bounds = array<i64: 8, 1>}, {transform_indices = @transform_4, window_bounds = array<i64: 1, 8, 256>}]} {
    %c0 = arith.constant 0 : index
    %c0_0 = arith.constant 0 : index
    %c0_1 = arith.constant 0 : index
    %c0_2 = arith.constant 0 : index
    %0 = vector.load %arg1[%c0, %c0_0, %c0_1, %c0_2] : memref<1x18x18x4xf32, #tpu.memory_space<vmem>>, vector<1x18x18x4xf32>
    %c0_3 = arith.constant 0 : index
    %c0_4 = arith.constant 0 : index
    %c0_5 = arith.constant 0 : index
    %1 = vector.load %arg2[%c0_3, %c0_4, %c0_5] : memref<9x1x4xf32, #tpu.memory_space<vmem>>, vector<9x1x4xf32>
    %c0_6 = arith.constant 0 : index
    %c0_7 = arith.constant 0 : index
    %2 = vector.load %arg3[%c0_6, %c0_7] : memref<8x4xf32, #tpu.memory_space<vmem>>, vector<8x4xf32>
    %c0_8 = arith.constant 0 : index
    %c0_9 = arith.constant 0 : index
    %3 = vector.load %arg4[%c0_8, %c0_9] : memref<8x1xf32, #tpu.memory_space<vmem>>, vector<8x1xf32>
    %4 = vector.extract_strided_slice %0 {offsets = [0, 0, 0, 0], sizes = [1, 18, 16, 4], strides = [1, 1, 1, 1]} : vector<1x18x18x4xf32> to vector<1x18x16x4xf32>
    %5 = vector.extract_strided_slice %4 {offsets = [0, 0, 0, 0], sizes = [1, 16, 16, 4], strides = [1, 1, 1, 1]} : vector<1x18x16x4xf32> to vector<1x16x16x4xf32>
    %6 = vector.extract_strided_slice %1 {offsets = [0, 0, 0], sizes = [1, 1, 4], strides = [1, 1, 1]} : vector<9x1x4xf32> to vector<1x1x4xf32>
    %7 = vector.shape_cast %6 : vector<1x1x4xf32> to vector<1x4xf32>
    %8 = vector.shape_cast %7 : vector<1x4xf32> to vector<1x1x1x4xf32>
    %9 = vector.broadcast %8 : vector<1x1x1x4xf32> to vector<1x16x16x4xf32>
    %10 = arith.mulf %5, %9 : vector<1x16x16x4xf32>
    %11 = vector.extract_strided_slice %4 {offsets = [0, 1, 0, 0], sizes = [1, 16, 16, 4], strides = [1, 1, 1, 1]} : vector<1x18x16x4xf32> to vector<1x16x16x4xf32>
    %12 = vector.extract_strided_slice %1 {offsets = [3, 0, 0], sizes = [1, 1, 4], strides = [1, 1, 1]} : vector<9x1x4xf32> to vector<1x1x4xf32>
    %13 = vector.shape_cast %12 : vector<1x1x4xf32> to vector<1x4xf32>
    %14 = vector.shape_cast %13 : vector<1x4xf32> to vector<1x1x1x4xf32>
    %15 = vector.broadcast %14 : vector<1x1x1x4xf32> to vector<1x16x16x4xf32>
    %16 = arith.mulf %11, %15 : vector<1x16x16x4xf32>
    %17 = arith.addf %10, %16 : vector<1x16x16x4xf32>
    %18 = vector.extract_strided_slice %4 {offsets = [0, 2, 0, 0], sizes = [1, 16, 16, 4], strides = [1, 1, 1, 1]} : vector<1x18x16x4xf32> to vector<1x16x16x4xf32>
    %19 = vector.extract_strided_slice %1 {offsets = [6, 0, 0], sizes = [1, 1, 4], strides = [1, 1, 1]} : vector<9x1x4xf32> to vector<1x1x4xf32>
    %20 = vector.shape_cast %19 : vector<1x1x4xf32> to vector<1x4xf32>
    %21 = vector.shape_cast %20 : vector<1x4xf32> to vector<1x1x1x4xf32>
    %22 = vector.broadcast %21 : vector<1x1x1x4xf32> to vector<1x16x16x4xf32>
    %23 = arith.mulf %18, %22 : vector<1x16x16x4xf32>
    %24 = arith.addf %17, %23 : vector<1x16x16x4xf32>
    %25 = vector.extract_strided_slice %0 {offsets = [0, 0, 1, 0], sizes = [1, 18, 16, 4], strides = [1, 1, 1, 1]} : vector<1x18x18x4xf32> to vector<1x18x16x4xf32>
    %26 = vector.extract_strided_slice %25 {offsets = [0, 0, 0, 0], sizes = [1, 16, 16, 4], strides = [1, 1, 1, 1]} : vector<1x18x16x4xf32> to vector<1x16x16x4xf32>
    %27 = vector.extract_strided_slice %1 {offsets = [1, 0, 0], sizes = [1, 1, 4], strides = [1, 1, 1]} : vector<9x1x4xf32> to vector<1x1x4xf32>
    %28 = vector.shape_cast %27 : vector<1x1x4xf32> to vector<1x4xf32>
    %29 = vector.shape_cast %28 : vector<1x4xf32> to vector<1x1x1x4xf32>
    %30 = vector.broadcast %29 : vector<1x1x1x4xf32> to vector<1x16x16x4xf32>
    %31 = arith.mulf %26, %30 : vector<1x16x16x4xf32>
    %32 = arith.addf %24, %31 : vector<1x16x16x4xf32>
    %33 = vector.extract_strided_slice %25 {offsets = [0, 1, 0, 0], sizes = [1, 16, 16, 4], strides = [1, 1, 1, 1]} : vector<1x18x16x4xf32> to vector<1x16x16x4xf32>
    %34 = vector.extract_strided_slice %1 {offsets = [4, 0, 0], sizes = [1, 1, 4], strides = [1, 1, 1]} : vector<9x1x4xf32> to vector<1x1x4xf32>
    %35 = vector.shape_cast %34 : vector<1x1x4xf32> to vector<1x4xf32>
    %36 = vector.shape_cast %35 : vector<1x4xf32> to vector<1x1x1x4xf32>
    %37 = vector.broadcast %36 : vector<1x1x1x4xf32> to vector<1x16x16x4xf32>
    %38 = arith.mulf %33, %37 : vector<1x16x16x4xf32>
    %39 = arith.addf %32, %38 : vector<1x16x16x4xf32>
    %40 = vector.extract_strided_slice %25 {offsets = [0, 2, 0, 0], sizes = [1, 16, 16, 4], strides = [1, 1, 1, 1]} : vector<1x18x16x4xf32> to vector<1x16x16x4xf32>
    %41 = vector.extract_strided_slice %1 {offsets = [7, 0, 0], sizes = [1, 1, 4], strides = [1, 1, 1]} : vector<9x1x4xf32> to vector<1x1x4xf32>
    %42 = vector.shape_cast %41 : vector<1x1x4xf32> to vector<1x4xf32>
    %43 = vector.shape_cast %42 : vector<1x4xf32> to vector<1x1x1x4xf32>
    %44 = vector.broadcast %43 : vector<1x1x1x4xf32> to vector<1x16x16x4xf32>
    %45 = arith.mulf %40, %44 : vector<1x16x16x4xf32>
    %46 = arith.addf %39, %45 : vector<1x16x16x4xf32>
    %47 = vector.extract_strided_slice %0 {offsets = [0, 0, 2, 0], sizes = [1, 18, 16, 4], strides = [1, 1, 1, 1]} : vector<1x18x18x4xf32> to vector<1x18x16x4xf32>
    %48 = vector.extract_strided_slice %47 {offsets = [0, 0, 0, 0], sizes = [1, 16, 16, 4], strides = [1, 1, 1, 1]} : vector<1x18x16x4xf32> to vector<1x16x16x4xf32>
    %49 = vector.extract_strided_slice %1 {offsets = [2, 0, 0], sizes = [1, 1, 4], strides = [1, 1, 1]} : vector<9x1x4xf32> to vector<1x1x4xf32>
    %50 = vector.shape_cast %49 : vector<1x1x4xf32> to vector<1x4xf32>
    %51 = vector.shape_cast %50 : vector<1x4xf32> to vector<1x1x1x4xf32>
    %52 = vector.broadcast %51 : vector<1x1x1x4xf32> to vector<1x16x16x4xf32>
    %53 = arith.mulf %48, %52 : vector<1x16x16x4xf32>
    %54 = arith.addf %46, %53 : vector<1x16x16x4xf32>
    %55 = vector.extract_strided_slice %47 {offsets = [0, 1, 0, 0], sizes = [1, 16, 16, 4], strides = [1, 1, 1, 1]} : vector<1x18x16x4xf32> to vector<1x16x16x4xf32>
    %56 = vector.extract_strided_slice %1 {offsets = [5, 0, 0], sizes = [1, 1, 4], strides = [1, 1, 1]} : vector<9x1x4xf32> to vector<1x1x4xf32>
    %57 = vector.shape_cast %56 : vector<1x1x4xf32> to vector<1x4xf32>
    %58 = vector.shape_cast %57 : vector<1x4xf32> to vector<1x1x1x4xf32>
    %59 = vector.broadcast %58 : vector<1x1x1x4xf32> to vector<1x16x16x4xf32>
    %60 = arith.mulf %55, %59 : vector<1x16x16x4xf32>
    %61 = arith.addf %54, %60 : vector<1x16x16x4xf32>
    %62 = vector.extract_strided_slice %47 {offsets = [0, 2, 0, 0], sizes = [1, 16, 16, 4], strides = [1, 1, 1, 1]} : vector<1x18x16x4xf32> to vector<1x16x16x4xf32>
    %63 = vector.extract_strided_slice %1 {offsets = [8, 0, 0], sizes = [1, 1, 4], strides = [1, 1, 1]} : vector<9x1x4xf32> to vector<1x1x4xf32>
    %64 = vector.shape_cast %63 : vector<1x1x4xf32> to vector<1x4xf32>
    %65 = vector.shape_cast %64 : vector<1x4xf32> to vector<1x1x1x4xf32>
    %66 = vector.broadcast %65 : vector<1x1x1x4xf32> to vector<1x16x16x4xf32>
    %67 = arith.mulf %62, %66 : vector<1x16x16x4xf32>
    %68 = arith.addf %61, %67 : vector<1x16x16x4xf32>
    %69 = vector.shape_cast %68 : vector<1x16x16x4xf32> to vector<256x4xf32>
    %cst = arith.constant dense<0.000000e+00> : vector<8x256xf32>
    %70 = tpu.matmul %2, %69, %cst {dimension_numbers = #tpu.dot_dimension_numbers<[1], [1], [0], [0], [0, 0, 1, 0], [], []>} : vector<8x4xf32>, vector<256x4xf32>, vector<8x256xf32> -> vector<8x256xf32>
    %71 = vector.broadcast %3 : vector<8x1xf32> to vector<8x256xf32>
    %72 = arith.addf %70, %71 : vector<8x256xf32>
    %c0_10 = arith.constant 0 : index
    %c0_11 = arith.constant 0 : index
    %c0_12 = arith.constant 0 : index
    %73 = vector.load %arg5[%c0_10, %c0_11, %c0_12] : memref<1x8x256xf32, #tpu.memory_space<vmem>>, vector<1x8x256xf32>
    %74 = vector.shape_cast %73 : vector<1x8x256xf32> to vector<8x256xf32>
    %75 = vector.shape_cast %72 : vector<8x256xf32> to vector<1x8x256xf32>
    tpu.vector_store %arg5[%c0_10, %c0_11, %c0_12], %75 {strides = array<i32>} : memref<1x8x256xf32, #tpu.memory_space<vmem>>, vector<1x8x256xf32>,
    return
  }
  func.func @transform_0(%arg0: i32) -> (i32, i32, i32, i32) {
    %c0_i32 = arith.constant 0 : i32
    %c0_i32_0 = arith.constant 0 : i32
    %c0_i32_1 = arith.constant 0 : i32
    %c0_i32_2 = arith.constant 0 : i32
    return %arg0, %c0_i32, %c0_i32_0, %c0_i32_1 : i32, i32, i32, i32
  }
  func.func @transform_1(%arg0: i32) -> (i32, i32, i32) {
    %c0_i32 = arith.constant 0 : i32
    %c0_i32_0 = arith.constant 0 : i32
    %c0_i32_1 = arith.constant 0 : i32
    %c0_i32_2 = arith.constant 0 : i32
    return %c0_i32, %c0_i32_0, %c0_i32_1 : i32, i32, i32
  }
  func.func @transform_2(%arg0: i32) -> (i32, i32) {
    %c0_i32 = arith.constant 0 : i32
    %c0_i32_0 = arith.constant 0 : i32
    %c0_i32_1 = arith.constant 0 : i32
    return %c0_i32, %c0_i32_0 : i32, i32
  }
  func.func @transform_3(%arg0: i32) -> (i32, i32) {
    %c0_i32 = arith.constant 0 : i32
    %c0_i32_0 = arith.constant 0 : i32
    %c0_i32_1 = arith.constant 0 : i32
    return %c0_i32, %c0_i32_0 : i32, i32
  }
  func.func @transform_4(%arg0: i32) -> (i32, i32, i32) {
    %c0_i32 = arith.constant 0 : i32
    %c0_i32_0 = arith.constant 0 : i32
    %c0_i32_1 = arith.constant 0 : i32
    return %arg0, %c0_i32, %c0_i32_0 : i32, i32, i32
  }
}

</mosaic_0001>

<llo_original>
// kernel: tpu_custom_call.1
$region0: #{tpu_custom_call.1}
  #allocation0 [shape = 'u32[]', space=smem, size = 0x4, offset = 0x4, fixed_abs, tag = 'smem constant byte address 0x4 - core index']
  #allocation1 [shape = 'u32[144,128]{1,0:T(1,128)}', space=vmem, size = 0x12000, scoped, tag = 'internal scratch']
  %s0 = inlined_call_operand.vmem [shape: f32[2,18,18,4], index: 0, kind: input, shape index: {}]
  %s1 = inlined_call_operand.vmem [shape: f32[9,1,4], index: 1, kind: input, shape index: {}]
  %s2 = inlined_call_operand.vmem [shape: f32[8,4], index: 2, kind: input, shape index: {}]
  %s3 = inlined_call_operand.vmem [shape: f32[8,1], index: 3, kind: input, shape index: {}]
  %s4 = inlined_call_operand.hbm [shape: f32[2,8,256], index: 4, kind: output, shape index: {}]
  %s5 = sld [smem:[#allocation0]]
  $region49: #{tpu_custom_call.1} parent=0
    _
  %s7 = ssub.s32 1, %s5
  %s8 = scalar_select 0, %s7, %s5
  $region1: #{tpu_custom_call.1} parent=0
    #allocation2 [shape = 'u8[16384]{0}', space=vmem, size = 0x4000, scoped, tag = 'output window, operand 0']
    #allocation3 [shape = 's32[2]{0}', space=sflag, size = 0x8, scoped, tag = 'scoped memory for tpu_custom_call.1']
    %9 = vsyncpa [#allocation3], 0
    %s10 = scalar_lea.sflag [#allocation3], 1
    %11 = vsyncpa %s10, 0
    loop: start=0, step=1, limit=4
    $region2: #{tpu_custom_call.1} parent=1 // loop_pre_header
      _
    $region3: #{tpu_custom_call.1} parent=1 // loop_header
      %s13 = sphi 0, %s17
      %p14 = scmp.ge.s32.totalorder %s13, 4
      %s23 = sphi 0, %s25
      %s26 = sphi 0, %s23
      %s27 = sphi 0, %s26
      %s43 = sphi 0, %s27
      %s47 = sphi 0, %s47
      %s49 = sphi 0, %s47
      %s50 = sphi 0, %s49
      %s64 = sphi 0, %s50
      %s68 = sphi 0, %s68
      %s70 = sphi 0, %s68
      %s71 = sphi 0, %s70
      %s85 = sphi 0, %s71
      %s89 = sphi 0, %s89
      %s91 = sphi 0, %s89
      %s92 = sphi 0, %s91
      %s106 = sphi 0, %s92
      %s112 = sphi 0, %s114
      %s115 = sphi 0, %s112
      %s116 = sphi 0, %s115
      %s132 = sphi 0, %s116
    $region4: #{tpu_custom_call.1} parent=1 // loop_header_branch
      %16 = sbr.rel (%p14) target = $region8
    $region5: #{tpu_custom_call.1} parent=1 // loop_body
      %s18 = ssub.s32 %s13, 1
      %s19 = ssub.s32 %s13, 2
      %s20 = sadd.s32 %s13, 1
      %s21 = ssub.s32 %s13, %s20
      %p22 = scmp.eq.s32.totalorder %s21, 0
      %s24 = sadd.s32 %s23, 1
      %s25 = scalar_select %p22, %s23, %s24
      %p28 = pneg %p22
      %p29 = scmp.eq.s32.totalorder %s13, 1
      %p30 = por %p28, %p29
      %p31 = scmp.ne.s32.totalorder %s23, %s26
      %p32 = scmp.eq.s32.totalorder %s13, 0
      %p33 = por %p31, %p32
      %p34 = scmp.ne.s32.totalorder %s23, %s26
      %p35 = scmp.eq.s32.totalorder %s18, 1
      %p36 = por %p34, %p35
      %p37 = scmp.ne.s32.totalorder %s26, %s27
      %p38 = scmp.eq.s32.totalorder %s18, 0
      %p39 = por %p37, %p38
      %p40 = scmp.ne.s32.totalorder %s26, %s27
      %p41 = scmp.eq.s32.totalorder %s19, 1
      %p42 = por %p40, %p41
      %p44 = scmp.ne.s32.totalorder %s27, %s43
      %p45 = scmp.eq.s32.totalorder %s19, 0
      %p46 = por %p44, %p45
      %s48 = sadd.s32 %s47, 1
      %p51 = scmp.eq.s32.totalorder %s13, 1
      %p52 = scmp.ne.s32.totalorder %s47, %s49
      %p53 = scmp.eq.s32.totalorder %s13, 0
      %p54 = por %p52, %p53
      %p55 = scmp.ne.s32.totalorder %s47, %s49
      %p56 = scmp.eq.s32.totalorder %s18, 1
      %p57 = por %p55, %p56
      %p58 = scmp.ne.s32.totalorder %s49, %s50
      %p59 = scmp.eq.s32.totalorder %s18, 0
      %p60 = por %p58, %p59
      %p61 = scmp.ne.s32.totalorder %s49, %s50
      %p62 = scmp.eq.s32.totalorder %s19, 1
      %p63 = por %p61, %p62
      %p65 = scmp.ne.s32.totalorder %s50, %s64
      %p66 = scmp.eq.s32.totalorder %s19, 0
      %p67 = por %p65, %p66
      %s69 = sadd.s32 %s68, 1
      %p72 = scmp.eq.s32.totalorder %s13, 1
      %p73 = scmp.ne.s32.totalorder %s68, %s70
      %p74 = scmp.eq.s32.totalorder %s13, 0
      %p75 = por %p73, %p74
      %p76 = scmp.ne.s32.totalorder %s68, %s70
      %p77 = scmp.eq.s32.totalorder %s18, 1
      %p78 = por %p76, %p77
      %p79 = scmp.ne.s32.totalorder %s70, %s71
      %p80 = scmp.eq.s32.totalorder %s18, 0
      %p81 = por %p79, %p80
      %p82 = scmp.ne.s32.totalorder %s70, %s71
      %p83 = scmp.eq.s32.totalorder %s19, 1
      %p84 = por %p82, %p83
      %p86 = scmp.ne.s32.totalorder %s71, %s85
      %p87 = scmp.eq.s32.totalorder %s19, 0
      %p88 = por %p86, %p87
      %s90 = sadd.s32 %s89, 1
      %p93 = scmp.eq.s32.totalorder %s13, 1
      %p94 = scmp.ne.s32.totalorder %s89, %s91
      %p95 = scmp.eq.s32.totalorder %s13, 0
      %p96 = por %p94, %p95
      %p97 = scmp.ne.s32.totalorder %s89, %s91
      %p98 = scmp.eq.s32.totalorder %s18, 1
      %p99 = por %p97, %p98
      %p100 = scmp.ne.s32.totalorder %s91, %s92
      %p101 = scmp.eq.s32.totalorder %s18, 0
      %p102 = por %p100, %p101
      %p103 = scmp.ne.s32.totalorder %s91, %s92
      %p104 = scmp.eq.s32.totalorder %s19, 1
      %p105 = por %p103, %p104
      %p107 = scmp.ne.s32.totalorder %s92, %s106
      %p108 = scmp.eq.s32.totalorder %s19, 0
      %p109 = por %p107, %p108
      %s110 = ssub.s32 %s13, %s20
      %p111 = scmp.eq.s32.totalorder %s110, 0
      %s113 = sadd.s32 %s112, 1
      %s114 = scalar_select %p111, %s112, %s113
      %p117 = pneg %p111
      %p118 = scmp.eq.s32.totalorder %s13, 1
      %p119 = por %p117, %p118
      %p120 = scmp.ne.s32.totalorder %s112, %s115
      %p121 = scmp.eq.s32.totalorder %s13, 0
      %p122 = por %p120, %p121
      %p123 = scmp.ne.s32.totalorder %s112, %s115
      %p124 = scmp.eq.s32.totalorder %s18, 1
      %p125 = por %p123, %p124
      %p126 = scmp.ne.s32.totalorder %s115, %s116
      %p127 = scmp.eq.s32.totalorder %s18, 0
      %p128 = por %p126, %p127
      %p129 = scmp.ne.s32.totalorder %s115, %s116
      %p130 = scmp.eq.s32.totalorder %s19, 1
      %p131 = por %p129, %p130
      %p133 = scmp.ne.s32.totalorder %s116, %s132
      %p134 = scmp.eq.s32.totalorder %s19, 0
      %p135 = por %p133, %p134
      %p136 = scmp.le.s32.totalorder 1, %s13
      %p137 = scmp.lt.s32.totalorder %s13, 3
      %p138 = pnand %p136, %p137
      %p139 = pneg %p138
      // Predicated region
      $region9: #{tpu_custom_call.1} parent=5 // pred_check
        _
      $region10: #{tpu_custom_call.1} parent=5 // pred_check_branch
        %141 = sbr.rel (%p138) target = $region12
      $region11: #{tpu_custom_call.1} parent=5 // pred_region
        %s142 = ssub.s32 %s13, 1
        // Predicated region
        $region13: #{tpu_custom_call.1} parent=11 // pred_check
          %p143 = pneg %p60
        $region14: #{tpu_custom_call.1} parent=11 // pred_check_branch
          %145 = sbr.rel (%p143) target = $region16
        $region15: #{tpu_custom_call.1} parent=11 // pred_region
          _
        $region16: #{tpu_custom_call.1} parent=11 // pred_fallthru
          _
        // Predicated region
        $region17: #{tpu_custom_call.1} parent=11 // pred_check
          %p146 = pneg %p81
        $region18: #{tpu_custom_call.1} parent=11 // pred_check_branch
          %148 = sbr.rel (%p146) target = $region20
        $region19: #{tpu_custom_call.1} parent=11 // pred_region
          _
        $region20: #{tpu_custom_call.1} parent=11 // pred_fallthru
          _
        // Predicated region
        $region21: #{tpu_custom_call.1} parent=11 // pred_check
          %p149 = pneg %p102
        $region22: #{tpu_custom_call.1} parent=11 // pred_check_branch
          %151 = sbr.rel (%p149) target = $region24
        $region23: #{tpu_custom_call.1} parent=11 // pred_region
          _
        $region24: #{tpu_custom_call.1} parent=11 // pred_fallthru
          _
      $region12: #{tpu_custom_call.1} parent=5 // pred_fallthru
        _
      %p152 = scmp.lt.s32.totalorder %s13, 2
      // Predicated region
      $region25: #{tpu_custom_call.1} parent=5 // pred_check
        %p153 = pneg %p152
      $region26: #{tpu_custom_call.1} parent=5 // pred_check_branch
        %155 = sbr.rel (%p153) target = $region28
      $region27: #{tpu_custom_call.1} parent=5 // pred_region
        // Predicated region
        $region29: #{tpu_custom_call.1} parent=27 // pred_check
          %p156 = pneg %p33
        $region30: #{tpu_custom_call.1} parent=27 // pred_check_branch
          %158 = sbr.rel (%p156) target = $region32
        $region31: #{tpu_custom_call.1} parent=27 // pred_region
          %p159 = scmp.lt.s32.totalorder %s13, 1
          %s160 = scalar_select %p159, %s13, 1
          %s161 = smul.addr %s160, 54
          %s162 = smul.addr %s161, 8
          %s163 = scalar_lea.vmem %s0, %s162
        $region32: #{tpu_custom_call.1} parent=27 // pred_fallthru
          _
      $region28: #{tpu_custom_call.1} parent=5 // pred_fallthru
        _
      %p164 = scmp.le.s32.totalorder 1, %s13
      %p165 = scmp.lt.s32.totalorder %s13, 3
      %p166 = pnand %p164, %p165
      %p167 = pneg %p166
      // Predicated region
      $region33: #{tpu_custom_call.1} parent=5 // pred_check
        _
      $region34: #{tpu_custom_call.1} parent=5 // pred_check_branch
        %169 = sbr.rel (%p166) target = $region36
      $region35: #{tpu_custom_call.1} parent=5 // pred_region
        %s170 = ssub.s32 %s13, 1
        %p171 = scmp.lt.s32.totalorder %s18, 1
        %s172 = scalar_select %p171, %s18, 1
        %s173 = smul.addr %s172, 54
        %s174 = smul.addr %s173, 8
        %s175 = scalar_lea.vmem %s0, %s174
        %p176 = pneg %p39
        %p177 = pneg %p36
        %p178 = pneg %p60
        %p179 = pneg %p57
        %p180 = pneg %p81
        %p181 = pneg %p78
        %p182 = pneg %p102
        %p183 = pneg %p99
        %p184 = pneg %p128
        %p185 = pneg %p125
        %s186 = sand.u32 %s115, 1
        %s187 = scalar_lea.sflag [#allocation3], %s186
        %s188 = sand.u32 %s115, 1
        %s189 = smul.addr %s188, 16
        %s190 = scalar_lea.vmem [#allocation2], %s189
        %p191 = scmp.lt.s32.totalorder %s18, 1
        %s192 = scalar_select %p191, %s18, 1
        %s193 = smul.addr %s192, 54
        %s194 = smul.addr %s193, 8
        %s195 = scalar_lea.vmem %s0, %s194
        %v196 = vld [vmem:[%s195] sm:$0xff]
        %v197 = vld [vmem:[%s195 + $0x8] sm:$0xff]
        %v198 = vld [vmem:[%s195 + $0x10] sm:$0x3]
        %v199 = vld [vmem:[%s195 + $0x18] sm:$0xff]
        %v200 = vld [vmem:[%s195 + $0x20] sm:$0xff]
        %v201 = vld [vmem:[%s195 + $0x28] sm:$0x3]
        %v202 = vld [vmem:[%s195 + $0x30] sm:$0xff]
        %v203 = vld [vmem:[%s195 + $0x38] sm:$0xff]
        %v204 = vld [vmem:[%s195 + $0x40] sm:$0x3]
        %v205 = vld [vmem:[%s195 + $0x48] sm:$0xff]
        %v206 = vld [vmem:[%s195 + $0x50] sm:$0xff]
        %v207 = vld [vmem:[%s195 + $0x58] sm:$0x3]
        %v208 = vld [vmem:[%s195 + $0x60] sm:$0xff]
        %v209 = vld [vmem:[%s195 + $0x68] sm:$0xff]
        %v210 = vld [vmem:[%s195 + $0x70] sm:$0x3]
        %v211 = vld [vmem:[%s195 + $0x78] sm:$0xff]
        %v212 = vld [vmem:[%s195 + $0x80] sm:$0xff]
        %v213 = vld [vmem:[%s195 + $0x88] sm:$0x3]
        %v214 = vld [vmem:[%s195 + $0x90] sm:$0xff]
        %v215 = vld [vmem:[%s195 + $0x98] sm:$0xff]
        %v216 = vld [vmem:[%s195 + $0xa0] sm:$0x3]
        %v217 = vld [vmem:[%s195 + $0xa8] sm:$0xff]
        %v218 = vld [vmem:[%s195 + $0xb0] sm:$0xff]
        %v219 = vld [vmem:[%s195 + $0xb8] sm:$0x3]
        %v220 = vld [vmem:[%s195 + $0xc0] sm:$0xff]
        %v221 = vld [vmem:[%s195 + $0xc8] sm:$0xff]
        %v222 = vld [vmem:[%s195 + $0xd0] sm:$0x3]
        %v223 = vld [vmem:[%s195 + $0xd8] sm:$0xff]
        %v224 = vld [vmem:[%s195 + $0xe0] sm:$0xff]
        %v225 = vld [vmem:[%s195 + $0xe8] sm:$0x3]
        %v226 = vld [vmem:[%s195 + $0xf0] sm:$0xff]
        %v227 = vld [vmem:[%s195 + $0xf8] sm:$0xff]
        %v228 = vld [vmem:[%s195 + $0x100] sm:$0x3]
        %v229 = vld [vmem:[%s195 + $0x108] sm:$0xff]
        %v230 = vld [vmem:[%s195 + $0x110] sm:$0xff]
        %v231 = vld [vmem:[%s195 + $0x118] sm:$0x3]
        %v232 = vld [vmem:[%s195 + $0x120] sm:$0xff]
        %v233 = vld [vmem:[%s195 + $0x128] sm:$0xff]
        %v234 = vld [vmem:[%s195 + $0x130] sm:$0x3]
        %v235 = vld [vmem:[%s195 + $0x138] sm:$0xff]
        %v236 = vld [vmem:[%s195 + $0x140] sm:$0xff]
        %v237 = vld [vmem:[%s195 + $0x148] sm:$0x3]
        %v238 = vld [vmem:[%s195 + $0x150] sm:$0xff]
        %v239 = vld [vmem:[%s195 + $0x158] sm:$0xff]
        %v240 = vld [vmem:[%s195 + $0x160] sm:$0x3]
        %v241 = vld [vmem:[%s195 + $0x168] sm:$0xff]
        %v242 = vld [vmem:[%s195 + $0x170] sm:$0xff]
        %v243 = vld [vmem:[%s195 + $0x178] sm:$0x3]
        %v244 = vld [vmem:[%s195 + $0x180] sm:$0xff]
        %v245 = vld [vmem:[%s195 + $0x188] sm:$0xff]
        %v246 = vld [vmem:[%s195 + $0x190] sm:$0x3]
        %v247 = vld [vmem:[%s195 + $0x198] sm:$0xff]
        %v248 = vld [vmem:[%s195 + $0x1a0] sm:$0xff]
        %v249 = vld [vmem:[%s195 + $0x1a8] sm:$0x3]
        %v250 = vld [vmem:[%s1] sm:$0x1]
        %v251 = vld [vmem:[%s1 + $0x1] sm:$0x1]
        %v252 = vld [vmem:[%s1 + $0x2] sm:$0x1]
        %v253 = vld [vmem:[%s1 + $0x3] sm:$0x1]
        %v254 = vld [vmem:[%s1 + $0x4] sm:$0x1]
        %v255 = vld [vmem:[%s1 + $0x5] sm:$0x1]
        %v256 = vld [vmem:[%s1 + $0x6] sm:$0x1]
        %v257 = vld [vmem:[%s1 + $0x7] sm:$0x1]
        %v258 = vld [vmem:[%s1 + $0x8] sm:$0x1]
        %v259 = vld [vmem:[%s2] sm:$0xff]
        %v260 = vld [vmem:[%s3] sm:$0xff]
        %v262 = vlaneseq
        %v263 = vshrl.u32 %v262, 7
        %v264 = vsub.s32 0, %v263
        %v265 = vrot.slane %v250, %v264
        %v267 = vmul.f32 %v196, %v265
        %v268 = vmul.f32 %v197, %v265
        %v269 = vmul.f32 %v199, %v265
        %v270 = vmul.f32 %v200, %v265
        %v271 = vmul.f32 %v202, %v265
        %v272 = vmul.f32 %v203, %v265
        %v273 = vmul.f32 %v205, %v265
        %v274 = vmul.f32 %v206, %v265
        %v275 = vmul.f32 %v208, %v265
        %v276 = vmul.f32 %v209, %v265
        %v277 = vmul.f32 %v211, %v265
        %v278 = vmul.f32 %v212, %v265
        %v279 = vmul.f32 %v214, %v265
        %v280 = vmul.f32 %v215, %v265
        %v281 = vmul.f32 %v217, %v265
        %v282 = vmul.f32 %v218, %v265
        %v283 = vmul.f32 %v220, %v265
        %v284 = vmul.f32 %v221, %v265
        %v285 = vmul.f32 %v223, %v265
        %v286 = vmul.f32 %v224, %v265
        %v287 = vmul.f32 %v226, %v265
        %v288 = vmul.f32 %v227, %v265
        %v289 = vmul.f32 %v229, %v265
        %v290 = vmul.f32 %v230, %v265
        %v291 = vmul.f32 %v232, %v265
        %v292 = vmul.f32 %v233, %v265
        %v293 = vmul.f32 %v235, %v265
        %v294 = vmul.f32 %v236, %v265
        %v295 = vmul.f32 %v238, %v265
        %v296 = vmul.f32 %v239, %v265
        %v297 = vmul.f32 %v241, %v265
        %v298 = vmul.f32 %v242, %v265
        %v300 = vlaneseq
        %v301 = vshrl.u32 %v300, 7
        %v302 = vsub.s32 0, %v301
        %v303 = vrot.slane %v253, %v302
        %v305 = vmul.f32 %v199, %v303
        %v306 = vmul.f32 %v200, %v303
        %v307 = vmul.f32 %v202, %v303
        %v308 = vmul.f32 %v203, %v303
        %v309 = vmul.f32 %v205, %v303
        %v310 = vmul.f32 %v206, %v303
        %v311 = vmul.f32 %v208, %v303
        %v312 = vmul.f32 %v209, %v303
        %v313 = vmul.f32 %v211, %v303
        %v314 = vmul.f32 %v212, %v303
        %v315 = vmul.f32 %v214, %v303
        %v316 = vmul.f32 %v215, %v303
        %v317 = vmul.f32 %v217, %v303
        %v318 = vmul.f32 %v218, %v303
        %v319 = vmul.f32 %v220, %v303
        %v320 = vmul.f32 %v221, %v303
        %v321 = vmul.f32 %v223, %v303
        %v322 = vmul.f32 %v224, %v303
        %v323 = vmul.f32 %v226, %v303
        %v324 = vmul.f32 %v227, %v303
        %v325 = vmul.f32 %v229, %v303
        %v326 = vmul.f32 %v230, %v303
        %v327 = vmul.f32 %v232, %v303
        %v328 = vmul.f32 %v233, %v303
        %v329 = vmul.f32 %v235, %v303
        %v330 = vmul.f32 %v236, %v303
        %v331 = vmul.f32 %v238, %v303
        %v332 = vmul.f32 %v239, %v303
        %v333 = vmul.f32 %v241, %v303
        %v334 = vmul.f32 %v242, %v303
        %v335 = vmul.f32 %v244, %v303
        %v336 = vmul.f32 %v245, %v303
        %v337 = vadd.f32 %v267, %v305
        %v338 = vadd.f32 %v268, %v306
        %v339 = vadd.f32 %v269, %v307
        %v340 = vadd.f32 %v270, %v308
        %v341 = vadd.f32 %v271, %v309
        %v342 = vadd.f32 %v272, %v310
        %v343 = vadd.f32 %v273, %v311
        %v344 = vadd.f32 %v274, %v312
        %v345 = vadd.f32 %v275, %v313
        %v346 = vadd.f32 %v276, %v314
        %v347 = vadd.f32 %v277, %v315
        %v348 = vadd.f32 %v278, %v316
        %v349 = vadd.f32 %v279, %v317
        %v350 = vadd.f32 %v280, %v318
        %v351 = vadd.f32 %v281, %v319
        %v352 = vadd.f32 %v282, %v320
        %v353 = vadd.f32 %v283, %v321
        %v354 = vadd.f32 %v284, %v322
        %v355 = vadd.f32 %v285, %v323
        %v356 = vadd.f32 %v286, %v324
        %v357 = vadd.f32 %v287, %v325
        %v358 = vadd.f32 %v288, %v326
        %v359 = vadd.f32 %v289, %v327
        %v360 = vadd.f32 %v290, %v328
        %v361 = vadd.f32 %v291, %v329
        %v362 = vadd.f32 %v292, %v330
        %v363 = vadd.f32 %v293, %v331
        %v364 = vadd.f32 %v294, %v332
        %v365 = vadd.f32 %v295, %v333
        %v366 = vadd.f32 %v296, %v334
        %v367 = vadd.f32 %v297, %v335
        %v368 = vadd.f32 %v298, %v336
        %v370 = vlaneseq
        %v371 = vshrl.u32 %v370, 7
        %v372 = vsub.s32 0, %v371
        %v373 = vrot.slane %v256, %v372
        %v375 = vmul.f32 %v202, %v373
        %v376 = vmul.f32 %v203, %v373
        %v377 = vmul.f32 %v205, %v373
        %v378 = vmul.f32 %v206, %v373
        %v379 = vmul.f32 %v208, %v373
        %v380 = vmul.f32 %v209, %v373
        %v381 = vmul.f32 %v211, %v373
        %v382 = vmul.f32 %v212, %v373
        %v383 = vmul.f32 %v214, %v373
        %v384 = vmul.f32 %v215, %v373
        %v385 = vmul.f32 %v217, %v373
        %v386 = vmul.f32 %v218, %v373
        %v387 = vmul.f32 %v220, %v373
        %v388 = vmul.f32 %v221, %v373
        %v389 = vmul.f32 %v223, %v373
        %v390 = vmul.f32 %v224, %v373
        %v391 = vmul.f32 %v226, %v373
        %v392 = vmul.f32 %v227, %v373
        %v393 = vmul.f32 %v229, %v373
        %v394 = vmul.f32 %v230, %v373
        %v395 = vmul.f32 %v232, %v373
        %v396 = vmul.f32 %v233, %v373
        %v397 = vmul.f32 %v235, %v373
        %v398 = vmul.f32 %v236, %v373
        %v399 = vmul.f32 %v238, %v373
        %v400 = vmul.f32 %v239, %v373
        %v401 = vmul.f32 %v241, %v373
        %v402 = vmul.f32 %v242, %v373
        %v403 = vmul.f32 %v244, %v373
        %v404 = vmul.f32 %v245, %v373
        %v405 = vmul.f32 %v247, %v373
        %v406 = vmul.f32 %v248, %v373
        %v407 = vadd.f32 %v337, %v375
        %v408 = vadd.f32 %v338, %v376
        %v409 = vadd.f32 %v339, %v377
        %v410 = vadd.f32 %v340, %v378
        %v411 = vadd.f32 %v341, %v379
        %v412 = vadd.f32 %v342, %v380
        %v413 = vadd.f32 %v343, %v381
        %v414 = vadd.f32 %v344, %v382
        %v415 = vadd.f32 %v345, %v383
        %v416 = vadd.f32 %v346, %v384
        %v417 = vadd.f32 %v347, %v385
        %v418 = vadd.f32 %v348, %v386
        %v419 = vadd.f32 %v349, %v387
        %v420 = vadd.f32 %v350, %v388
        %v421 = vadd.f32 %v351, %v389
        %v422 = vadd.f32 %v352, %v390
        %v423 = vadd.f32 %v353, %v391
        %v424 = vadd.f32 %v354, %v392
        %v425 = vadd.f32 %v355, %v393
        %v426 = vadd.f32 %v356, %v394
        %v427 = vadd.f32 %v357, %v395
        %v428 = vadd.f32 %v358, %v396
        %v429 = vadd.f32 %v359, %v397
        %v430 = vadd.f32 %v360, %v398
        %v431 = vadd.f32 %v361, %v399
        %v432 = vadd.f32 %v362, %v400
        %v433 = vadd.f32 %v363, %v401
        %v434 = vadd.f32 %v364, %v402
        %v435 = vadd.f32 %v365, %v403
        %v436 = vadd.f32 %v366, %v404
        %v437 = vadd.f32 %v367, %v405
        %v438 = vadd.f32 %v368, %v406
        %v440 = vlaneseq
        %v441 = vshrl.u32 %v440, 7
        %v442 = vsub.s32 0, %v441
        %v443 = vrot.slane %v251, %v442
        %v445 = vmul.f32 %v196, %v443
        %v446 = vmul.f32 %v197, %v443
        %v447 = vmul.f32 %v198, %v443
        %v448 = vmul.f32 %v199, %v443
        %v449 = vmul.f32 %v200, %v443
        %v450 = vmul.f32 %v201, %v443
        %v451 = vmul.f32 %v202, %v443
        %v452 = vmul.f32 %v203, %v443
        %v453 = vmul.f32 %v204, %v443
        %v454 = vmul.f32 %v205, %v443
        %v455 = vmul.f32 %v206, %v443
        %v456 = vmul.f32 %v207, %v443
        %v457 = vmul.f32 %v208, %v443
        %v458 = vmul.f32 %v209, %v443
        %v459 = vmul.f32 %v210, %v443
        %v460 = vmul.f32 %v211, %v443
        %v461 = vmul.f32 %v212, %v443
        %v462 = vmul.f32 %v213, %v443
        %v463 = vmul.f32 %v214, %v443
        %v464 = vmul.f32 %v215, %v443
        %v465 = vmul.f32 %v216, %v443
        %v466 = vmul.f32 %v217, %v443
        %v467 = vmul.f32 %v218, %v443
        %v468 = vmul.f32 %v219, %v443
        %v469 = vmul.f32 %v220, %v443
        %v470 = vmul.f32 %v221, %v443
        %v471 = vmul.f32 %v222, %v443
        %v472 = vmul.f32 %v223, %v443
        %v473 = vmul.f32 %v224, %v443
        %v474 = vmul.f32 %v225, %v443
        %v475 = vmul.f32 %v226, %v443
        %v476 = vmul.f32 %v227, %v443
        %v477 = vmul.f32 %v228, %v443
        %v478 = vmul.f32 %v229, %v443
        %v479 = vmul.f32 %v230, %v443
        %v480 = vmul.f32 %v231, %v443
        %v481 = vmul.f32 %v232, %v443
        %v482 = vmul.f32 %v233, %v443
        %v483 = vmul.f32 %v234, %v443
        %v484 = vmul.f32 %v235, %v443
        %v485 = vmul.f32 %v236, %v443
        %v486 = vmul.f32 %v237, %v443
        %v487 = vmul.f32 %v238, %v443
        %v488 = vmul.f32 %v239, %v443
        %v489 = vmul.f32 %v240, %v443
        %v490 = vmul.f32 %v241, %v443
        %v491 = vmul.f32 %v242, %v443
        %v492 = vmul.f32 %v243, %v443
        %vm541 = vcmask 1046528
        %v542 = vrot.slane %v445, 1
        %v543 = vrot.slane %v446, 1
        %v544 = vsel %vm541, %v542, %v543
        %v545 = vrot.slane %v447, 1
        %v546 = vsel %vm541, %v543, %v545
        %v547 = vrot.slane %v448, 1
        %v548 = vrot.slane %v449, 1
        %v549 = vsel %vm541, %v547, %v548
        %v550 = vrot.slane %v450, 1
        %v551 = vsel %vm541, %v548, %v550
        %v552 = vrot.slane %v451, 1
        %v553 = vrot.slane %v452, 1
        %v554 = vsel %vm541, %v552, %v553
        %v555 = vrot.slane %v453, 1
        %v556 = vsel %vm541, %v553, %v555
        %v557 = vrot.slane %v454, 1
        %v558 = vrot.slane %v455, 1
        %v559 = vsel %vm541, %v557, %v558
        %v560 = vrot.slane %v456, 1
        %v561 = vsel %vm541, %v558, %v560
        %v562 = vrot.slane %v457, 1
        %v563 = vrot.slane %v458, 1
        %v564 = vsel %vm541, %v562, %v563
        %v565 = vrot.slane %v459, 1
        %v566 = vsel %vm541, %v563, %v565
        %v567 = vrot.slane %v460, 1
        %v568 = vrot.slane %v461, 1
        %v569 = vsel %vm541, %v567, %v568
        %v570 = vrot.slane %v462, 1
        %v571 = vsel %vm541, %v568, %v570
        %v572 = vrot.slane %v463, 1
        %v573 = vrot.slane %v464, 1
        %v574 = vsel %vm541, %v572, %v573
        %v575 = vrot.slane %v465, 1
        %v576 = vsel %vm541, %v573, %v575
        %v577 = vrot.slane %v466, 1
        %v578 = vrot.slane %v467, 1
        %v579 = vsel %vm541, %v577, %v578
        %v580 = vrot.slane %v468, 1
        %v581 = vsel %vm541, %v578, %v580
        %v582 = vrot.slane %v469, 1
        %v583 = vrot.slane %v470, 1
        %v584 = vsel %vm541, %v582, %v583
        %v585 = vrot.slane %v471, 1
        %v586 = vsel %vm541, %v583, %v585
        %v587 = vrot.slane %v472, 1
        %v588 = vrot.slane %v473, 1
        %v589 = vsel %vm541, %v587, %v588
        %v590 = vrot.slane %v474, 1
        %v591 = vsel %vm541, %v588, %v590
        %v592 = vrot.slane %v475, 1
        %v593 = vrot.slane %v476, 1
        %v594 = vsel %vm541, %v592, %v593
        %v595 = vrot.slane %v477, 1
        %v596 = vsel %vm541, %v593, %v595
        %v597 = vrot.slane %v478, 1
        %v598 = vrot.slane %v479, 1
        %v599 = vsel %vm541, %v597, %v598
        %v600 = vrot.slane %v480, 1
        %v601 = vsel %vm541, %v598, %v600
        %v602 = vrot.slane %v481, 1
        %v603 = vrot.slane %v482, 1
        %v604 = vsel %vm541, %v602, %v603
        %v605 = vrot.slane %v483, 1
        %v606 = vsel %vm541, %v603, %v605
        %v607 = vrot.slane %v484, 1
        %v608 = vrot.slane %v485, 1
        %v609 = vsel %vm541, %v607, %v608
        %v610 = vrot.slane %v486, 1
        %v611 = vsel %vm541, %v608, %v610
        %v612 = vrot.slane %v487, 1
        %v613 = vrot.slane %v488, 1
        %v614 = vsel %vm541, %v612, %v613
        %v615 = vrot.slane %v489, 1
        %v616 = vsel %vm541, %v613, %v615
        %v617 = vrot.slane %v490, 1
        %v618 = vrot.slane %v491, 1
        %v619 = vsel %vm541, %v617, %v618
        %v620 = vrot.slane %v492, 1
        %v621 = vsel %vm541, %v618, %v620
        %v654 = vadd.f32 %v407, %v544
        %v655 = vadd.f32 %v408, %v546
        %v656 = vadd.f32 %v409, %v549
        %v657 = vadd.f32 %v410, %v551
        %v658 = vadd.f32 %v411, %v554
        %v659 = vadd.f32 %v412, %v556
        %v660 = vadd.f32 %v413, %v559
        %v661 = vadd.f32 %v414, %v561
        %v662 = vadd.f32 %v415, %v564
        %v663 = vadd.f32 %v416, %v566
        %v664 = vadd.f32 %v417, %v569
        %v665 = vadd.f32 %v418, %v571
        %v666 = vadd.f32 %v419, %v574
        %v667 = vadd.f32 %v420, %v576
        %v668 = vadd.f32 %v421, %v579
        %v669 = vadd.f32 %v422, %v581
        %v670 = vadd.f32 %v423, %v584
        %v671 = vadd.f32 %v424, %v586
        %v672 = vadd.f32 %v425, %v589
        %v673 = vadd.f32 %v426, %v591
        %v674 = vadd.f32 %v427, %v594
        %v675 = vadd.f32 %v428, %v596
        %v676 = vadd.f32 %v429, %v599
        %v677 = vadd.f32 %v430, %v601
        %v678 = vadd.f32 %v431, %v604
        %v679 = vadd.f32 %v432, %v606
        %v680 = vadd.f32 %v433, %v609
        %v681 = vadd.f32 %v434, %v611
        %v682 = vadd.f32 %v435, %v614
        %v683 = vadd.f32 %v436, %v616
        %v684 = vadd.f32 %v437, %v619
        %v685 = vadd.f32 %v438, %v621
        %v687 = vlaneseq
        %v688 = vshrl.u32 %v687, 7
        %v689 = vsub.s32 0, %v688
        %v690 = vrot.slane %v254, %v689
        %v692 = vmul.f32 %v199, %v690
        %v693 = vmul.f32 %v200, %v690
        %v694 = vmul.f32 %v201, %v690
        %v695 = vmul.f32 %v202, %v690
        %v696 = vmul.f32 %v203, %v690
        %v697 = vmul.f32 %v204, %v690
        %v698 = vmul.f32 %v205, %v690
        %v699 = vmul.f32 %v206, %v690
        %v700 = vmul.f32 %v207, %v690
        %v701 = vmul.f32 %v208, %v690
        %v702 = vmul.f32 %v209, %v690
        %v703 = vmul.f32 %v210, %v690
        %v704 = vmul.f32 %v211, %v690
        %v705 = vmul.f32 %v212, %v690
        %v706 = vmul.f32 %v213, %v690
        %v707 = vmul.f32 %v214, %v690
        %v708 = vmul.f32 %v215, %v690
        %v709 = vmul.f32 %v216, %v690
        %v710 = vmul.f32 %v217, %v690
        %v711 = vmul.f32 %v218, %v690
        %v712 = vmul.f32 %v219, %v690
        %v713 = vmul.f32 %v220, %v690
        %v714 = vmul.f32 %v221, %v690
        %v715 = vmul.f32 %v222, %v690
        %v716 = vmul.f32 %v223, %v690
        %v717 = vmul.f32 %v224, %v690
        %v718 = vmul.f32 %v225, %v690
        %v719 = vmul.f32 %v226, %v690
        %v720 = vmul.f32 %v227, %v690
        %v721 = vmul.f32 %v228, %v690
        %v722 = vmul.f32 %v229, %v690
        %v723 = vmul.f32 %v230, %v690
        %v724 = vmul.f32 %v231, %v690
        %v725 = vmul.f32 %v232, %v690
        %v726 = vmul.f32 %v233, %v690
        %v727 = vmul.f32 %v234, %v690
        %v728 = vmul.f32 %v235, %v690
        %v729 = vmul.f32 %v236, %v690
        %v730 = vmul.f32 %v237, %v690
        %v731 = vmul.f32 %v238, %v690
        %v732 = vmul.f32 %v239, %v690
        %v733 = vmul.f32 %v240, %v690
        %v734 = vmul.f32 %v241, %v690
        %v735 = vmul.f32 %v242, %v690
        %v736 = vmul.f32 %v243, %v690
        %v737 = vmul.f32 %v244, %v690
        %v738 = vmul.f32 %v245, %v690
        %v739 = vmul.f32 %v246, %v690
        %v788 = vrot.slane %v692, 1
        %v789 = vrot.slane %v693, 1
        %v790 = vsel %vm541, %v788, %v789
        %v791 = vrot.slane %v694, 1
        %v792 = vsel %vm541, %v789, %v791
        %v793 = vrot.slane %v695, 1
        %v794 = vrot.slane %v696, 1
        %v795 = vsel %vm541, %v793, %v794
        %v796 = vrot.slane %v697, 1
        %v797 = vsel %vm541, %v794, %v796
        %v798 = vrot.slane %v698, 1
        %v799 = vrot.slane %v699, 1
        %v800 = vsel %vm541, %v798, %v799
        %v801 = vrot.slane %v700, 1
        %v802 = vsel %vm541, %v799, %v801
        %v803 = vrot.slane %v701, 1
        %v804 = vrot.slane %v702, 1
        %v805 = vsel %vm541, %v803, %v804
        %v806 = vrot.slane %v703, 1
        %v807 = vsel %vm541, %v804, %v806
        %v808 = vrot.slane %v704, 1
        %v809 = vrot.slane %v705, 1
        %v810 = vsel %vm541, %v808, %v809
        %v811 = vrot.slane %v706, 1
        %v812 = vsel %vm541, %v809, %v811
        %v813 = vrot.slane %v707, 1
        %v814 = vrot.slane %v708, 1
        %v815 = vsel %vm541, %v813, %v814
        %v816 = vrot.slane %v709, 1
        %v817 = vsel %vm541, %v814, %v816
        %v818 = vrot.slane %v710, 1
        %v819 = vrot.slane %v711, 1
        %v820 = vsel %vm541, %v818, %v819
        %v821 = vrot.slane %v712, 1
        %v822 = vsel %vm541, %v819, %v821
        %v823 = vrot.slane %v713, 1
        %v824 = vrot.slane %v714, 1
        %v825 = vsel %vm541, %v823, %v824
        %v826 = vrot.slane %v715, 1
        %v827 = vsel %vm541, %v824, %v826
        %v828 = vrot.slane %v716, 1
        %v829 = vrot.slane %v717, 1
        %v830 = vsel %vm541, %v828, %v829
        %v831 = vrot.slane %v718, 1
        %v832 = vsel %vm541, %v829, %v831
        %v833 = vrot.slane %v719, 1
        %v834 = vrot.slane %v720, 1
        %v835 = vsel %vm541, %v833, %v834
        %v836 = vrot.slane %v721, 1
        %v837 = vsel %vm541, %v834, %v836
        %v838 = vrot.slane %v722, 1
        %v839 = vrot.slane %v723, 1
        %v840 = vsel %vm541, %v838, %v839
        %v841 = vrot.slane %v724, 1
        %v842 = vsel %vm541, %v839, %v841
        %v843 = vrot.slane %v725, 1
        %v844 = vrot.slane %v726, 1
        %v845 = vsel %vm541, %v843, %v844
        %v846 = vrot.slane %v727, 1
        %v847 = vsel %vm541, %v844, %v846
        %v848 = vrot.slane %v728, 1
        %v849 = vrot.slane %v729, 1
        %v850 = vsel %vm541, %v848, %v849
        %v851 = vrot.slane %v730, 1
        %v852 = vsel %vm541, %v849, %v851
        %v853 = vrot.slane %v731, 1
        %v854 = vrot.slane %v732, 1
        %v855 = vsel %vm541, %v853, %v854
        %v856 = vrot.slane %v733, 1
        %v857 = vsel %vm541, %v854, %v856
        %v858 = vrot.slane %v734, 1
        %v859 = vrot.slane %v735, 1
        %v860 = vsel %vm541, %v858, %v859
        %v861 = vrot.slane %v736, 1
        %v862 = vsel %vm541, %v859, %v861
        %v863 = vrot.slane %v737, 1
        %v864 = vrot.slane %v738, 1
        %v865 = vsel %vm541, %v863, %v864
        %v866 = vrot.slane %v739, 1
        %v867 = vsel %vm541, %v864, %v866
        %v900 = vadd.f32 %v654, %v790
        %v901 = vadd.f32 %v655, %v792
        %v902 = vadd.f32 %v656, %v795
        %v903 = vadd.f32 %v657, %v797
        %v904 = vadd.f32 %v658, %v800
        %v905 = vadd.f32 %v659, %v802
        %v906 = vadd.f32 %v660, %v805
        %v907 = vadd.f32 %v661, %v807
        %v908 = vadd.f32 %v662, %v810
        %v909 = vadd.f32 %v663, %v812
        %v910 = vadd.f32 %v664, %v815
        %v911 = vadd.f32 %v665, %v817
        %v912 = vadd.f32 %v666, %v820
        %v913 = vadd.f32 %v667, %v822
        %v914 = vadd.f32 %v668, %v825
        %v915 = vadd.f32 %v669, %v827
        %v916 = vadd.f32 %v670, %v830
        %v917 = vadd.f32 %v671, %v832
        %v918 = vadd.f32 %v672, %v835
        %v919 = vadd.f32 %v673, %v837
        %v920 = vadd.f32 %v674, %v840
        %v921 = vadd.f32 %v675, %v842
        %v922 = vadd.f32 %v676, %v845
        %v923 = vadd.f32 %v677, %v847
        %v924 = vadd.f32 %v678, %v850
        %v925 = vadd.f32 %v679, %v852
        %v926 = vadd.f32 %v680, %v855
        %v927 = vadd.f32 %v681, %v857
        %v928 = vadd.f32 %v682, %v860
        %v929 = vadd.f32 %v683, %v862
        %v930 = vadd.f32 %v684, %v865
        %v931 = vadd.f32 %v685, %v867
        %v933 = vlaneseq
        %v934 = vshrl.u32 %v933, 7
        %v935 = vsub.s32 0, %v934
        %v936 = vrot.slane %v257, %v935
        %v938 = vmul.f32 %v202, %v936
        %v939 = vmul.f32 %v203, %v936
        %v940 = vmul.f32 %v204, %v936
        %v941 = vmul.f32 %v205, %v936
        %v942 = vmul.f32 %v206, %v936
        %v943 = vmul.f32 %v207, %v936
        %v944 = vmul.f32 %v208, %v936
        %v945 = vmul.f32 %v209, %v936
        %v946 = vmul.f32 %v210, %v936
        %v947 = vmul.f32 %v211, %v936
        %v948 = vmul.f32 %v212, %v936
        %v949 = vmul.f32 %v213, %v936
        %v950 = vmul.f32 %v214, %v936
        %v951 = vmul.f32 %v215, %v936
        %v952 = vmul.f32 %v216, %v936
        %v953 = vmul.f32 %v217, %v936
        %v954 = vmul.f32 %v218, %v936
        %v955 = vmul.f32 %v219, %v936
        %v956 = vmul.f32 %v220, %v936
        %v957 = vmul.f32 %v221, %v936
        %v958 = vmul.f32 %v222, %v936
        %v959 = vmul.f32 %v223, %v936
        %v960 = vmul.f32 %v224, %v936
        %v961 = vmul.f32 %v225, %v936
        %v962 = vmul.f32 %v226, %v936
        %v963 = vmul.f32 %v227, %v936
        %v964 = vmul.f32 %v228, %v936
        %v965 = vmul.f32 %v229, %v936
        %v966 = vmul.f32 %v230, %v936
        %v967 = vmul.f32 %v231, %v936
        %v968 = vmul.f32 %v232, %v936
        %v969 = vmul.f32 %v233, %v936
        %v970 = vmul.f32 %v234, %v936
        %v971 = vmul.f32 %v235, %v936
        %v972 = vmul.f32 %v236, %v936
        %v973 = vmul.f32 %v237, %v936
        %v974 = vmul.f32 %v238, %v936
        %v975 = vmul.f32 %v239, %v936
        %v976 = vmul.f32 %v240, %v936
        %v977 = vmul.f32 %v241, %v936
        %v978 = vmul.f32 %v242, %v936
        %v979 = vmul.f32 %v243, %v936
        %v980 = vmul.f32 %v244, %v936
        %v981 = vmul.f32 %v245, %v936
        %v982 = vmul.f32 %v246, %v936
        %v983 = vmul.f32 %v247, %v936
        %v984 = vmul.f32 %v248, %v936
        %v985 = vmul.f32 %v249, %v936
        %v1034 = vrot.slane %v938, 1
        %v1035 = vrot.slane %v939, 1
        %v1036 = vsel %vm541, %v1034, %v1035
        %v1037 = vrot.slane %v940, 1
        %v1038 = vsel %vm541, %v1035, %v1037
        %v1039 = vrot.slane %v941, 1
        %v1040 = vrot.slane %v942, 1
        %v1041 = vsel %vm541, %v1039, %v1040
        %v1042 = vrot.slane %v943, 1
        %v1043 = vsel %vm541, %v1040, %v1042
        %v1044 = vrot.slane %v944, 1
        %v1045 = vrot.slane %v945, 1
        %v1046 = vsel %vm541, %v1044, %v1045
        %v1047 = vrot.slane %v946, 1
        %v1048 = vsel %vm541, %v1045, %v1047
        %v1049 = vrot.slane %v947, 1
        %v1050 = vrot.slane %v948, 1
        %v1051 = vsel %vm541, %v1049, %v1050
        %v1052 = vrot.slane %v949, 1
        %v1053 = vsel %vm541, %v1050, %v1052
        %v1054 = vrot.slane %v950, 1
        %v1055 = vrot.slane %v951, 1
        %v1056 = vsel %vm541, %v1054, %v1055
        %v1057 = vrot.slane %v952, 1
        %v1058 = vsel %vm541, %v1055, %v1057
        %v1059 = vrot.slane %v953, 1
        %v1060 = vrot.slane %v954, 1
        %v1061 = vsel %vm541, %v1059, %v1060
        %v1062 = vrot.slane %v955, 1
        %v1063 = vsel %vm541, %v1060, %v1062
        %v1064 = vrot.slane %v956, 1
        %v1065 = vrot.slane %v957, 1
        %v1066 = vsel %vm541, %v1064, %v1065
        %v1067 = vrot.slane %v958, 1
        %v1068 = vsel %vm541, %v1065, %v1067
        %v1069 = vrot.slane %v959, 1
        %v1070 = vrot.slane %v960, 1
        %v1071 = vsel %vm541, %v1069, %v1070
        %v1072 = vrot.slane %v961, 1
        %v1073 = vsel %vm541, %v1070, %v1072
        %v1074 = vrot.slane %v962, 1
        %v1075 = vrot.slane %v963, 1
        %v1076 = vsel %vm541, %v1074, %v1075
        %v1077 = vrot.slane %v964, 1
        %v1078 = vsel %vm541, %v1075, %v1077
        %v1079 = vrot.slane %v965, 1
        %v1080 = vrot.slane %v966, 1
        %v1081 = vsel %vm541, %v1079, %v1080
        %v1082 = vrot.slane %v967, 1
        %v1083 = vsel %vm541, %v1080, %v1082
        %v1084 = vrot.slane %v968, 1
        %v1085 = vrot.slane %v969, 1
        %v1086 = vsel %vm541, %v1084, %v1085
        %v1087 = vrot.slane %v970, 1
        %v1088 = vsel %vm541, %v1085, %v1087
        %v1089 = vrot.slane %v971, 1
        %v1090 = vrot.slane %v972, 1
        %v1091 = vsel %vm541, %v1089, %v1090
        %v1092 = vrot.slane %v973, 1
        %v1093 = vsel %vm541, %v1090, %v1092
        %v1094 = vrot.slane %v974, 1
        %v1095 = vrot.slane %v975, 1
        %v1096 = vsel %vm541, %v1094, %v1095
        %v1097 = vrot.slane %v976, 1
        %v1098 = vsel %vm541, %v1095, %v1097
        %v1099 = vrot.slane %v977, 1
        %v1100 = vrot.slane %v978, 1
        %v1101 = vsel %vm541, %v1099, %v1100
        %v1102 = vrot.slane %v979, 1
        %v1103 = vsel %vm541, %v1100, %v1102
        %v1104 = vrot.slane %v980, 1
        %v1105 = vrot.slane %v981, 1
        %v1106 = vsel %vm541, %v1104, %v1105
        %v1107 = vrot.slane %v982, 1
        %v1108 = vsel %vm541, %v1105, %v1107
        %v1109 = vrot.slane %v983, 1
        %v1110 = vrot.slane %v984, 1
        %v1111 = vsel %vm541, %v1109, %v1110
        %v1112 = vrot.slane %v985, 1
        %v1113 = vsel %vm541, %v1110, %v1112
        %v1146 = vadd.f32 %v900, %v1036
        %v1147 = vadd.f32 %v901, %v1038
        %v1148 = vadd.f32 %v902, %v1041
        %v1149 = vadd.f32 %v903, %v1043
        %v1150 = vadd.f32 %v904, %v1046
        %v1151 = vadd.f32 %v905, %v1048
        %v1152 = vadd.f32 %v906, %v1051
        %v1153 = vadd.f32 %v907, %v1053
        %v1154 = vadd.f32 %v908, %v1056
        %v1155 = vadd.f32 %v909, %v1058
        %v1156 = vadd.f32 %v910, %v1061
        %v1157 = vadd.f32 %v911, %v1063
        %v1158 = vadd.f32 %v912, %v1066
        %v1159 = vadd.f32 %v913, %v1068
        %v1160 = vadd.f32 %v914, %v1071
        %v1161 = vadd.f32 %v915, %v1073
        %v1162 = vadd.f32 %v916, %v1076
        %v1163 = vadd.f32 %v917, %v1078
        %v1164 = vadd.f32 %v918, %v1081
        %v1165 = vadd.f32 %v919, %v1083
        %v1166 = vadd.f32 %v920, %v1086
        %v1167 = vadd.f32 %v921, %v1088
        %v1168 = vadd.f32 %v922, %v1091
        %v1169 = vadd.f32 %v923, %v1093
        %v1170 = vadd.f32 %v924, %v1096
        %v1171 = vadd.f32 %v925, %v1098
        %v1172 = vadd.f32 %v926, %v1101
        %v1173 = vadd.f32 %v927, %v1103
        %v1174 = vadd.f32 %v928, %v1106
        %v1175 = vadd.f32 %v929, %v1108
        %v1176 = vadd.f32 %v930, %v1111
        %v1177 = vadd.f32 %v931, %v1113
        %v1179 = vlaneseq
        %v1180 = vshrl.u32 %v1179, 7
        %v1181 = vsub.s32 0, %v1180
        %v1182 = vrot.slane %v252, %v1181
        %v1184 = vmul.f32 %v196, %v1182
        %v1185 = vmul.f32 %v197, %v1182
        %v1186 = vmul.f32 %v198, %v1182
        %v1187 = vmul.f32 %v199, %v1182
        %v1188 = vmul.f32 %v200, %v1182
        %v1189 = vmul.f32 %v201, %v1182
        %v1190 = vmul.f32 %v202, %v1182
        %v1191 = vmul.f32 %v203, %v1182
        %v1192 = vmul.f32 %v204, %v1182
        %v1193 = vmul.f32 %v205, %v1182
        %v1194 = vmul.f32 %v206, %v1182
        %v1195 = vmul.f32 %v207, %v1182
        %v1196 = vmul.f32 %v208, %v1182
        %v1197 = vmul.f32 %v209, %v1182
        %v1198 = vmul.f32 %v210, %v1182
        %v1199 = vmul.f32 %v211, %v1182
        %v1200 = vmul.f32 %v212, %v1182
        %v1201 = vmul.f32 %v213, %v1182
        %v1202 = vmul.f32 %v214, %v1182
        %v1203 = vmul.f32 %v215, %v1182
        %v1204 = vmul.f32 %v216, %v1182
        %v1205 = vmul.f32 %v217, %v1182
        %v1206 = vmul.f32 %v218, %v1182
        %v1207 = vmul.f32 %v219, %v1182
        %v1208 = vmul.f32 %v220, %v1182
        %v1209 = vmul.f32 %v221, %v1182
        %v1210 = vmul.f32 %v222, %v1182
        %v1211 = vmul.f32 %v223, %v1182
        %v1212 = vmul.f32 %v224, %v1182
        %v1213 = vmul.f32 %v225, %v1182
        %v1214 = vmul.f32 %v226, %v1182
        %v1215 = vmul.f32 %v227, %v1182
        %v1216 = vmul.f32 %v228, %v1182
        %v1217 = vmul.f32 %v229, %v1182
        %v1218 = vmul.f32 %v230, %v1182
        %v1219 = vmul.f32 %v231, %v1182
        %v1220 = vmul.f32 %v232, %v1182
        %v1221 = vmul.f32 %v233, %v1182
        %v1222 = vmul.f32 %v234, %v1182
        %v1223 = vmul.f32 %v235, %v1182
        %v1224 = vmul.f32 %v236, %v1182
        %v1225 = vmul.f32 %v237, %v1182
        %v1226 = vmul.f32 %v238, %v1182
        %v1227 = vmul.f32 %v239, %v1182
        %v1228 = vmul.f32 %v240, %v1182
        %v1229 = vmul.f32 %v241, %v1182
        %v1230 = vmul.f32 %v242, %v1182
        %v1231 = vmul.f32 %v243, %v1182
        %vm1280 = vcmask 1045504
        %v1281 = vrot.slane %v1184, 2
        %v1282 = vrot.slane %v1185, 2
        %v1283 = vsel %vm1280, %v1281, %v1282
        %v1284 = vrot.slane %v1186, 2
        %v1285 = vsel %vm1280, %v1282, %v1284
        %v1286 = vrot.slane %v1187, 2
        %v1287 = vrot.slane %v1188, 2
        %v1288 = vsel %vm1280, %v1286, %v1287
        %v1289 = vrot.slane %v1189, 2
        %v1290 = vsel %vm1280, %v1287, %v1289
        %v1291 = vrot.slane %v1190, 2
        %v1292 = vrot.slane %v1191, 2
        %v1293 = vsel %vm1280, %v1291, %v1292
        %v1294 = vrot.slane %v1192, 2
        %v1295 = vsel %vm1280, %v1292, %v1294
        %v1296 = vrot.slane %v1193, 2
        %v1297 = vrot.slane %v1194, 2
        %v1298 = vsel %vm1280, %v1296, %v1297
        %v1299 = vrot.slane %v1195, 2
        %v1300 = vsel %vm1280, %v1297, %v1299
        %v1301 = vrot.slane %v1196, 2
        %v1302 = vrot.slane %v1197, 2
        %v1303 = vsel %vm1280, %v1301, %v1302
        %v1304 = vrot.slane %v1198, 2
        %v1305 = vsel %vm1280, %v1302, %v1304
        %v1306 = vrot.slane %v1199, 2
        %v1307 = vrot.slane %v1200, 2
        %v1308 = vsel %vm1280, %v1306, %v1307
        %v1309 = vrot.slane %v1201, 2
        %v1310 = vsel %vm1280, %v1307, %v1309
        %v1311 = vrot.slane %v1202, 2
        %v1312 = vrot.slane %v1203, 2
        %v1313 = vsel %vm1280, %v1311, %v1312
        %v1314 = vrot.slane %v1204, 2
        %v1315 = vsel %vm1280, %v1312, %v1314
        %v1316 = vrot.slane %v1205, 2
        %v1317 = vrot.slane %v1206, 2
        %v1318 = vsel %vm1280, %v1316, %v1317
        %v1319 = vrot.slane %v1207, 2
        %v1320 = vsel %vm1280, %v1317, %v1319
        %v1321 = vrot.slane %v1208, 2
        %v1322 = vrot.slane %v1209, 2
        %v1323 = vsel %vm1280, %v1321, %v1322
        %v1324 = vrot.slane %v1210, 2
        %v1325 = vsel %vm1280, %v1322, %v1324
        %v1326 = vrot.slane %v1211, 2
        %v1327 = vrot.slane %v1212, 2
        %v1328 = vsel %vm1280, %v1326, %v1327
        %v1329 = vrot.slane %v1213, 2
        %v1330 = vsel %vm1280, %v1327, %v1329
        %v1331 = vrot.slane %v1214, 2
        %v1332 = vrot.slane %v1215, 2
        %v1333 = vsel %vm1280, %v1331, %v1332
        %v1334 = vrot.slane %v1216, 2
        %v1335 = vsel %vm1280, %v1332, %v1334
        %v1336 = vrot.slane %v1217, 2
        %v1337 = vrot.slane %v1218, 2
        %v1338 = vsel %vm1280, %v1336, %v1337
        %v1339 = vrot.slane %v1219, 2
        %v1340 = vsel %vm1280, %v1337, %v1339
        %v1341 = vrot.slane %v1220, 2
        %v1342 = vrot.slane %v1221, 2
        %v1343 = vsel %vm1280, %v1341, %v1342
        %v1344 = vrot.slane %v1222, 2
        %v1345 = vsel %vm1280, %v1342, %v1344
        %v1346 = vrot.slane %v1223, 2
        %v1347 = vrot.slane %v1224, 2
        %v1348 = vsel %vm1280, %v1346, %v1347
        %v1349 = vrot.slane %v1225, 2
        %v1350 = vsel %vm1280, %v1347, %v1349
        %v1351 = vrot.slane %v1226, 2
        %v1352 = vrot.slane %v1227, 2
        %v1353 = vsel %vm1280, %v1351, %v1352
        %v1354 = vrot.slane %v1228, 2
        %v1355 = vsel %vm1280, %v1352, %v1354
        %v1356 = vrot.slane %v1229, 2
        %v1357 = vrot.slane %v1230, 2
        %v1358 = vsel %vm1280, %v1356, %v1357
        %v1359 = vrot.slane %v1231, 2
        %v1360 = vsel %vm1280, %v1357, %v1359
        %v1393 = vadd.f32 %v1146, %v1283
        %v1394 = vadd.f32 %v1147, %v1285
        %v1395 = vadd.f32 %v1148, %v1288
        %v1396 = vadd.f32 %v1149, %v1290
        %v1397 = vadd.f32 %v1150, %v1293
        %v1398 = vadd.f32 %v1151, %v1295
        %v1399 = vadd.f32 %v1152, %v1298
        %v1400 = vadd.f32 %v1153, %v1300
        %v1401 = vadd.f32 %v1154, %v1303
        %v1402 = vadd.f32 %v1155, %v1305
        %v1403 = vadd.f32 %v1156, %v1308
        %v1404 = vadd.f32 %v1157, %v1310
        %v1405 = vadd.f32 %v1158, %v1313
        %v1406 = vadd.f32 %v1159, %v1315
        %v1407 = vadd.f32 %v1160, %v1318
        %v1408 = vadd.f32 %v1161, %v1320
        %v1409 = vadd.f32 %v1162, %v1323
        %v1410 = vadd.f32 %v1163, %v1325
        %v1411 = vadd.f32 %v1164, %v1328
        %v1412 = vadd.f32 %v1165, %v1330
        %v1413 = vadd.f32 %v1166, %v1333
        %v1414 = vadd.f32 %v1167, %v1335
        %v1415 = vadd.f32 %v1168, %v1338
        %v1416 = vadd.f32 %v1169, %v1340
        %v1417 = vadd.f32 %v1170, %v1343
        %v1418 = vadd.f32 %v1171, %v1345
        %v1419 = vadd.f32 %v1172, %v1348
        %v1420 = vadd.f32 %v1173, %v1350
        %v1421 = vadd.f32 %v1174, %v1353
        %v1422 = vadd.f32 %v1175, %v1355
        %v1423 = vadd.f32 %v1176, %v1358
        %v1424 = vadd.f32 %v1177, %v1360
        %v1426 = vlaneseq
        %v1427 = vshrl.u32 %v1426, 7
        %v1428 = vsub.s32 0, %v1427
        %v1429 = vrot.slane %v255, %v1428
        %v1431 = vmul.f32 %v199, %v1429
        %v1432 = vmul.f32 %v200, %v1429
        %v1433 = vmul.f32 %v201, %v1429
        %v1434 = vmul.f32 %v202, %v1429
        %v1435 = vmul.f32 %v203, %v1429
        %v1436 = vmul.f32 %v204, %v1429
        %v1437 = vmul.f32 %v205, %v1429
        %v1438 = vmul.f32 %v206, %v1429
        %v1439 = vmul.f32 %v207, %v1429
        %v1440 = vmul.f32 %v208, %v1429
        %v1441 = vmul.f32 %v209, %v1429
        %v1442 = vmul.f32 %v210, %v1429
        %v1443 = vmul.f32 %v211, %v1429
        %v1444 = vmul.f32 %v212, %v1429
        %v1445 = vmul.f32 %v213, %v1429
        %v1446 = vmul.f32 %v214, %v1429
        %v1447 = vmul.f32 %v215, %v1429
        %v1448 = vmul.f32 %v216, %v1429
        %v1449 = vmul.f32 %v217, %v1429
        %v1450 = vmul.f32 %v218, %v1429
        %v1451 = vmul.f32 %v219, %v1429
        %v1452 = vmul.f32 %v220, %v1429
        %v1453 = vmul.f32 %v221, %v1429
        %v1454 = vmul.f32 %v222, %v1429
        %v1455 = vmul.f32 %v223, %v1429
        %v1456 = vmul.f32 %v224, %v1429
        %v1457 = vmul.f32 %v225, %v1429
        %v1458 = vmul.f32 %v226, %v1429
        %v1459 = vmul.f32 %v227, %v1429
        %v1460 = vmul.f32 %v228, %v1429
        %v1461 = vmul.f32 %v229, %v1429
        %v1462 = vmul.f32 %v230, %v1429
        %v1463 = vmul.f32 %v231, %v1429
        %v1464 = vmul.f32 %v232, %v1429
        %v1465 = vmul.f32 %v233, %v1429
        %v1466 = vmul.f32 %v234, %v1429
        %v1467 = vmul.f32 %v235, %v1429
        %v1468 = vmul.f32 %v236, %v1429
        %v1469 = vmul.f32 %v237, %v1429
        %v1470 = vmul.f32 %v238, %v1429
        %v1471 = vmul.f32 %v239, %v1429
        %v1472 = vmul.f32 %v240, %v1429
        %v1473 = vmul.f32 %v241, %v1429
        %v1474 = vmul.f32 %v242, %v1429
        %v1475 = vmul.f32 %v243, %v1429
        %v1476 = vmul.f32 %v244, %v1429
        %v1477 = vmul.f32 %v245, %v1429
        %v1478 = vmul.f32 %v246, %v1429
        %v1527 = vrot.slane %v1431, 2
        %v1528 = vrot.slane %v1432, 2
        %v1529 = vsel %vm1280, %v1527, %v1528
        %v1530 = vrot.slane %v1433, 2
        %v1531 = vsel %vm1280, %v1528, %v1530
        %v1532 = vrot.slane %v1434, 2
        %v1533 = vrot.slane %v1435, 2
        %v1534 = vsel %vm1280, %v1532, %v1533
        %v1535 = vrot.slane %v1436, 2
        %v1536 = vsel %vm1280, %v1533, %v1535
        %v1537 = vrot.slane %v1437, 2
        %v1538 = vrot.slane %v1438, 2
        %v1539 = vsel %vm1280, %v1537, %v1538
        %v1540 = vrot.slane %v1439, 2
        %v1541 = vsel %vm1280, %v1538, %v1540
        %v1542 = vrot.slane %v1440, 2
        %v1543 = vrot.slane %v1441, 2
        %v1544 = vsel %vm1280, %v1542, %v1543
        %v1545 = vrot.slane %v1442, 2
        %v1546 = vsel %vm1280, %v1543, %v1545
        %v1547 = vrot.slane %v1443, 2
        %v1548 = vrot.slane %v1444, 2
        %v1549 = vsel %vm1280, %v1547, %v1548
        %v1550 = vrot.slane %v1445, 2
        %v1551 = vsel %vm1280, %v1548, %v1550
        %v1552 = vrot.slane %v1446, 2
        %v1553 = vrot.slane %v1447, 2
        %v1554 = vsel %vm1280, %v1552, %v1553
        %v1555 = vrot.slane %v1448, 2
        %v1556 = vsel %vm1280, %v1553, %v1555
        %v1557 = vrot.slane %v1449, 2
        %v1558 = vrot.slane %v1450, 2
        %v1559 = vsel %vm1280, %v1557, %v1558
        %v1560 = vrot.slane %v1451, 2
        %v1561 = vsel %vm1280, %v1558, %v1560
        %v1562 = vrot.slane %v1452, 2
        %v1563 = vrot.slane %v1453, 2
        %v1564 = vsel %vm1280, %v1562, %v1563
        %v1565 = vrot.slane %v1454, 2
        %v1566 = vsel %vm1280, %v1563, %v1565
        %v1567 = vrot.slane %v1455, 2
        %v1568 = vrot.slane %v1456, 2
        %v1569 = vsel %vm1280, %v1567, %v1568
        %v1570 = vrot.slane %v1457, 2
        %v1571 = vsel %vm1280, %v1568, %v1570
        %v1572 = vrot.slane %v1458, 2
        %v1573 = vrot.slane %v1459, 2
        %v1574 = vsel %vm1280, %v1572, %v1573
        %v1575 = vrot.slane %v1460, 2
        %v1576 = vsel %vm1280, %v1573, %v1575
        %v1577 = vrot.slane %v1461, 2
        %v1578 = vrot.slane %v1462, 2
        %v1579 = vsel %vm1280, %v1577, %v1578
        %v1580 = vrot.slane %v1463, 2
        %v1581 = vsel %vm1280, %v1578, %v1580
        %v1582 = vrot.slane %v1464, 2
        %v1583 = vrot.slane %v1465, 2
        %v1584 = vsel %vm1280, %v1582, %v1583
        %v1585 = vrot.slane %v1466, 2
        %v1586 = vsel %vm1280, %v1583, %v1585
        %v1587 = vrot.slane %v1467, 2
        %v1588 = vrot.slane %v1468, 2
        %v1589 = vsel %vm1280, %v1587, %v1588
        %v1590 = vrot.slane %v1469, 2
        %v1591 = vsel %vm1280, %v1588, %v1590
        %v1592 = vrot.slane %v1470, 2
        %v1593 = vrot.slane %v1471, 2
        %v1594 = vsel %vm1280, %v1592, %v1593
        %v1595 = vrot.slane %v1472, 2
        %v1596 = vsel %vm1280, %v1593, %v1595
        %v1597 = vrot.slane %v1473, 2
        %v1598 = vrot.slane %v1474, 2
        %v1599 = vsel %vm1280, %v1597, %v1598
        %v1600 = vrot.slane %v1475, 2
        %v1601 = vsel %vm1280, %v1598, %v1600
        %v1602 = vrot.slane %v1476, 2
        %v1603 = vrot.slane %v1477, 2
        %v1604 = vsel %vm1280, %v1602, %v1603
        %v1605 = vrot.slane %v1478, 2
        %v1606 = vsel %vm1280, %v1603, %v1605
        %v1639 = vadd.f32 %v1393, %v1529
        %v1640 = vadd.f32 %v1394, %v1531
        %v1641 = vadd.f32 %v1395, %v1534
        %v1642 = vadd.f32 %v1396, %v1536
        %v1643 = vadd.f32 %v1397, %v1539
        %v1644 = vadd.f32 %v1398, %v1541
        %v1645 = vadd.f32 %v1399, %v1544
        %v1646 = vadd.f32 %v1400, %v1546
        %v1647 = vadd.f32 %v1401, %v1549
        %v1648 = vadd.f32 %v1402, %v1551
        %v1649 = vadd.f32 %v1403, %v1554
        %v1650 = vadd.f32 %v1404, %v1556
        %v1651 = vadd.f32 %v1405, %v1559
        %v1652 = vadd.f32 %v1406, %v1561
        %v1653 = vadd.f32 %v1407, %v1564
        %v1654 = vadd.f32 %v1408, %v1566
        %v1655 = vadd.f32 %v1409, %v1569
        %v1656 = vadd.f32 %v1410, %v1571
        %v1657 = vadd.f32 %v1411, %v1574
        %v1658 = vadd.f32 %v1412, %v1576
        %v1659 = vadd.f32 %v1413, %v1579
        %v1660 = vadd.f32 %v1414, %v1581
        %v1661 = vadd.f32 %v1415, %v1584
        %v1662 = vadd.f32 %v1416, %v1586
        %v1663 = vadd.f32 %v1417, %v1589
        %v1664 = vadd.f32 %v1418, %v1591
        %v1665 = vadd.f32 %v1419, %v1594
        %v1666 = vadd.f32 %v1420, %v1596
        %v1667 = vadd.f32 %v1421, %v1599
        %v1668 = vadd.f32 %v1422, %v1601
        %v1669 = vadd.f32 %v1423, %v1604
        %v1670 = vadd.f32 %v1424, %v1606
        %v1672 = vlaneseq
        %v1673 = vshrl.u32 %v1672, 7
        %v1674 = vsub.s32 0, %v1673
        %v1675 = vrot.slane %v258, %v1674
        %v1677 = vmul.f32 %v202, %v1675
        %v1678 = vmul.f32 %v203, %v1675
        %v1679 = vmul.f32 %v204, %v1675
        %v1680 = vmul.f32 %v205, %v1675
        %v1681 = vmul.f32 %v206, %v1675
        %v1682 = vmul.f32 %v207, %v1675
        %v1683 = vmul.f32 %v208, %v1675
        %v1684 = vmul.f32 %v209, %v1675
        %v1685 = vmul.f32 %v210, %v1675
        %v1686 = vmul.f32 %v211, %v1675
        %v1687 = vmul.f32 %v212, %v1675
        %v1688 = vmul.f32 %v213, %v1675
        %v1689 = vmul.f32 %v214, %v1675
        %v1690 = vmul.f32 %v215, %v1675
        %v1691 = vmul.f32 %v216, %v1675
        %v1692 = vmul.f32 %v217, %v1675
        %v1693 = vmul.f32 %v218, %v1675
        %v1694 = vmul.f32 %v219, %v1675
        %v1695 = vmul.f32 %v220, %v1675
        %v1696 = vmul.f32 %v221, %v1675
        %v1697 = vmul.f32 %v222, %v1675
        %v1698 = vmul.f32 %v223, %v1675
        %v1699 = vmul.f32 %v224, %v1675
        %v1700 = vmul.f32 %v225, %v1675
        %v1701 = vmul.f32 %v226, %v1675
        %v1702 = vmul.f32 %v227, %v1675
        %v1703 = vmul.f32 %v228, %v1675
        %v1704 = vmul.f32 %v229, %v1675
        %v1705 = vmul.f32 %v230, %v1675
        %v1706 = vmul.f32 %v231, %v1675
        %v1707 = vmul.f32 %v232, %v1675
        %v1708 = vmul.f32 %v233, %v1675
        %v1709 = vmul.f32 %v234, %v1675
        %v1710 = vmul.f32 %v235, %v1675
        %v1711 = vmul.f32 %v236, %v1675
        %v1712 = vmul.f32 %v237, %v1675
        %v1713 = vmul.f32 %v238, %v1675
        %v1714 = vmul.f32 %v239, %v1675
        %v1715 = vmul.f32 %v240, %v1675
        %v1716 = vmul.f32 %v241, %v1675
        %v1717 = vmul.f32 %v242, %v1675
        %v1718 = vmul.f32 %v243, %v1675
        %v1719 = vmul.f32 %v244, %v1675
        %v1720 = vmul.f32 %v245, %v1675
        %v1721 = vmul.f32 %v246, %v1675
        %v1722 = vmul.f32 %v247, %v1675
        %v1723 = vmul.f32 %v248, %v1675
        %v1724 = vmul.f32 %v249, %v1675
        %v1773 = vrot.slane %v1677, 2
        %v1774 = vrot.slane %v1678, 2
        %v1775 = vsel %vm1280, %v1773, %v1774
        %v1776 = vrot.slane %v1679, 2
        %v1777 = vsel %vm1280, %v1774, %v1776
        %v1778 = vrot.slane %v1680, 2
        %v1779 = vrot.slane %v1681, 2
        %v1780 = vsel %vm1280, %v1778, %v1779
        %v1781 = vrot.slane %v1682, 2
        %v1782 = vsel %vm1280, %v1779, %v1781
        %v1783 = vrot.slane %v1683, 2
        %v1784 = vrot.slane %v1684, 2
        %v1785 = vsel %vm1280, %v1783, %v1784
        %v1786 = vrot.slane %v1685, 2
        %v1787 = vsel %vm1280, %v1784, %v1786
        %v1788 = vrot.slane %v1686, 2
        %v1789 = vrot.slane %v1687, 2
        %v1790 = vsel %vm1280, %v1788, %v1789
        %v1791 = vrot.slane %v1688, 2
        %v1792 = vsel %vm1280, %v1789, %v1791
        %v1793 = vrot.slane %v1689, 2
        %v1794 = vrot.slane %v1690, 2
        %v1795 = vsel %vm1280, %v1793, %v1794
        %v1796 = vrot.slane %v1691, 2
        %v1797 = vsel %vm1280, %v1794, %v1796
        %v1798 = vrot.slane %v1692, 2
        %v1799 = vrot.slane %v1693, 2
        %v1800 = vsel %vm1280, %v1798, %v1799
        %v1801 = vrot.slane %v1694, 2
        %v1802 = vsel %vm1280, %v1799, %v1801
        %v1803 = vrot.slane %v1695, 2
        %v1804 = vrot.slane %v1696, 2
        %v1805 = vsel %vm1280, %v1803, %v1804
        %v1806 = vrot.slane %v1697, 2
        %v1807 = vsel %vm1280, %v1804, %v1806
        %v1808 = vrot.slane %v1698, 2
        %v1809 = vrot.slane %v1699, 2
        %v1810 = vsel %vm1280, %v1808, %v1809
        %v1811 = vrot.slane %v1700, 2
        %v1812 = vsel %vm1280, %v1809, %v1811
        %v1813 = vrot.slane %v1701, 2
        %v1814 = vrot.slane %v1702, 2
        %v1815 = vsel %vm1280, %v1813, %v1814
        %v1816 = vrot.slane %v1703, 2
        %v1817 = vsel %vm1280, %v1814, %v1816
        %v1818 = vrot.slane %v1704, 2
        %v1819 = vrot.slane %v1705, 2
        %v1820 = vsel %vm1280, %v1818, %v1819
        %v1821 = vrot.slane %v1706, 2
        %v1822 = vsel %vm1280, %v1819, %v1821
        %v1823 = vrot.slane %v1707, 2
        %v1824 = vrot.slane %v1708, 2
        %v1825 = vsel %vm1280, %v1823, %v1824
        %v1826 = vrot.slane %v1709, 2
        %v1827 = vsel %vm1280, %v1824, %v1826
        %v1828 = vrot.slane %v1710, 2
        %v1829 = vrot.slane %v1711, 2
        %v1830 = vsel %vm1280, %v1828, %v1829
        %v1831 = vrot.slane %v1712, 2
        %v1832 = vsel %vm1280, %v1829, %v1831
        %v1833 = vrot.slane %v1713, 2
        %v1834 = vrot.slane %v1714, 2
        %v1835 = vsel %vm1280, %v1833, %v1834
        %v1836 = vrot.slane %v1715, 2
        %v1837 = vsel %vm1280, %v1834, %v1836
        %v1838 = vrot.slane %v1716, 2
        %v1839 = vrot.slane %v1717, 2
        %v1840 = vsel %vm1280, %v1838, %v1839
        %v1841 = vrot.slane %v1718, 2
        %v1842 = vsel %vm1280, %v1839, %v1841
        %v1843 = vrot.slane %v1719, 2
        %v1844 = vrot.slane %v1720, 2
        %v1845 = vsel %vm1280, %v1843, %v1844
        %v1846 = vrot.slane %v1721, 2
        %v1847 = vsel %vm1280, %v1844, %v1846
        %v1848 = vrot.slane %v1722, 2
        %v1849 = vrot.slane %v1723, 2
        %v1850 = vsel %vm1280, %v1848, %v1849
        %v1851 = vrot.slane %v1724, 2
        %v1852 = vsel %vm1280, %v1849, %v1851
        %v1885 = vadd.f32 %v1639, %v1775
        %v1886 = vadd.f32 %v1640, %v1777
        %v1887 = vadd.f32 %v1641, %v1780
        %v1888 = vadd.f32 %v1642, %v1782
        %v1889 = vadd.f32 %v1643, %v1785
        %v1890 = vadd.f32 %v1644, %v1787
        %v1891 = vadd.f32 %v1645, %v1790
        %v1892 = vadd.f32 %v1646, %v1792
        %v1893 = vadd.f32 %v1647, %v1795
        %v1894 = vadd.f32 %v1648, %v1797
        %v1895 = vadd.f32 %v1649, %v1800
        %v1896 = vadd.f32 %v1650, %v1802
        %v1897 = vadd.f32 %v1651, %v1805
        %v1898 = vadd.f32 %v1652, %v1807
        %v1899 = vadd.f32 %v1653, %v1810
        %v1900 = vadd.f32 %v1654, %v1812
        %v1901 = vadd.f32 %v1655, %v1815
        %v1902 = vadd.f32 %v1656, %v1817
        %v1903 = vadd.f32 %v1657, %v1820
        %v1904 = vadd.f32 %v1658, %v1822
        %v1905 = vadd.f32 %v1659, %v1825
        %v1906 = vadd.f32 %v1660, %v1827
        %v1907 = vadd.f32 %v1661, %v1830
        %v1908 = vadd.f32 %v1662, %v1832
        %v1909 = vadd.f32 %v1663, %v1835
        %v1910 = vadd.f32 %v1664, %v1837
        %v1911 = vadd.f32 %v1665, %v1840
        %v1912 = vadd.f32 %v1666, %v1842
        %v1913 = vadd.f32 %v1667, %v1845
        %v1914 = vadd.f32 %v1668, %v1847
        %v1915 = vadd.f32 %v1669, %v1850
        %v1916 = vadd.f32 %v1670, %v1852
        %1918 = vset.pattern.permute.xlu0 0
        %1919 = vperm.xlu0 %1918, %v260
        %v1920 = vpop.permute.xlu0 %1919
        %vm1922 = vcmask 31744
        %v1924 = vsel %vm1922, %v259, 0
        %v1927 = vsel %vm1922, %v1885, 0
        %v1930 = vsel %vm1922, %v1886, 0
        %v1933 = vsel %vm1922, %v1887, 0
        %v1936 = vsel %vm1922, %v1888, 0
        %v1939 = vsel %vm1922, %v1889, 0
        %v1942 = vsel %vm1922, %v1890, 0
        %v1945 = vsel %vm1922, %v1891, 0
        %v1948 = vsel %vm1922, %v1892, 0
        %v1951 = vsel %vm1922, %v1893, 0
        %v1954 = vsel %vm1922, %v1894, 0
        %v1957 = vsel %vm1922, %v1895, 0
        %v1960 = vsel %vm1922, %v1896, 0
        %v1963 = vsel %vm1922, %v1897, 0
        %v1966 = vsel %vm1922, %v1898, 0
        %v1969 = vsel %vm1922, %v1899, 0
        %v1972 = vsel %vm1922, %v1900, 0
        %v1975 = vsel %vm1922, %v1901, 0
        %v1978 = vsel %vm1922, %v1902, 0
        %v1981 = vsel %vm1922, %v1903, 0
        %v1984 = vsel %vm1922, %v1904, 0
        %v1987 = vsel %vm1922, %v1905, 0
        %v1990 = vsel %vm1922, %v1906, 0
        %v1993 = vsel %vm1922, %v1907, 0
        %v1996 = vsel %vm1922, %v1908, 0
        %v1999 = vsel %vm1922, %v1909, 0
        %v2002 = vsel %vm1922, %v1910, 0
        %v2005 = vsel %vm1922, %v1911, 0
        %v2008 = vsel %vm1922, %v1912, 0
        %v2011 = vsel %vm1922, %v1913, 0
        %v2014 = vsel %vm1922, %v1914, 0
        %v2017 = vsel %vm1922, %v1915, 0
        %v2020 = vsel %vm1922, %v1916, 0
        %2022 = vmatprep.subr.mxu0 0.0
        %2023 = vmatpush1.xpose.msra.mxu0 %v1927
        %2024 = vmatprep.subr.mxu0 0.0
        %2025 = vmatpush1.xpose.msra.mxu0 %v1930
        %2026 = vmatprep.subr.mxu0 0.0
        %2027 = vmatpush1.xpose.msra.mxu0 %v1933
        %2028 = vmatprep.subr.mxu0 0.0
        %2029 = vmatpush1.xpose.msra.mxu0 %v1936
        %2030 = vmatprep.subr.mxu0 0.0
        %2031 = vmatpush1.xpose.msra.mxu0 %v1939
        %2032 = vmatprep.subr.mxu0 0.0
        %2033 = vmatpush1.xpose.msra.mxu0 %v1942
        %2034 = vmatprep.subr.mxu0 0.0
        %2035 = vmatpush1.xpose.msra.mxu0 %v1945
        %2036 = vmatprep.subr.mxu0 0.0
        %2037 = vmatpush1.xpose.msra.mxu0 %v1948
        %2038 = vmatprep.subr.mxu0 0.0
        %2039 = vmatpush1.xpose.msra.mxu0 %v1951
        %2040 = vmatprep.subr.mxu0 0.0
        %2041 = vmatpush1.xpose.msra.mxu0 %v1954
        %2042 = vmatprep.subr.mxu0 0.0
        %2043 = vmatpush1.xpose.msra.mxu0 %v1957
        %2044 = vmatprep.subr.mxu0 0.0
        %2045 = vmatpush1.xpose.msra.mxu0 %v1960
        %2046 = vmatprep.subr.mxu0 0.0
        %2047 = vmatpush1.xpose.msra.mxu0 %v1963
        %2048 = vmatprep.subr.mxu0 0.0
        %2049 = vmatpush1.xpose.msra.mxu0 %v1966
        %2050 = vmatprep.subr.mxu0 0.0
        %2051 = vmatpush1.xpose.msra.mxu0 %v1969
        %2052 = vmatprep.subr.mxu0 0.0
        %2053 = vmatpush1.xpose.msra.mxu0 %v1972
        %2054 = vmatprep.subr.mxu0 0.0
        %2055 = vmatpush1.xpose.msra.mxu0 %v1975
        %2056 = vmatprep.subr.mxu0 0.0
        %2057 = vmatpush1.xpose.msra.mxu0 %v1978
        %2058 = vmatprep.subr.mxu0 0.0
        %2059 = vmatpush1.xpose.msra.mxu0 %v1981
        %2060 = vmatprep.subr.mxu0 0.0
        %2061 = vmatpush1.xpose.msra.mxu0 %v1984
        %2062 = vmatprep.subr.mxu0 0.0
        %2063 = vmatpush1.xpose.msra.mxu0 %v1987
        %2064 = vmatprep.subr.mxu0 0.0
        %2065 = vmatpush1.xpose.msra.mxu0 %v1990
        %2066 = vmatprep.subr.mxu0 0.0
        %2067 = vmatpush1.xpose.msra.mxu0 %v1993
        %2068 = vmatprep.subr.mxu0 0.0
        %2069 = vmatpush1.xpose.msra.mxu0 %v1996
        %2070 = vmatprep.subr.mxu0 0.0
        %2071 = vmatpush1.xpose.msra.mxu0 %v1999
        %2072 = vmatprep.subr.mxu0 0.0
        %2073 = vmatpush1.xpose.msra.mxu0 %v2002
        %2074 = vmatprep.subr.mxu0 0.0
        %2075 = vmatpush1.xpose.msra.mxu0 %v2005
        %2076 = vmatprep.subr.mxu0 0.0
        %2077 = vmatpush1.xpose.msra.mxu0 %v2008
        %2078 = vmatprep.subr.mxu0 0.0
        %2079 = vmatpush1.xpose.msra.mxu0 %v2011
        %2080 = vmatprep.subr.mxu0 0.0
        %2081 = vmatpush1.xpose.msra.mxu0 %v2014
        %2082 = vmatprep.subr.mxu0 0.0
        %2083 = vmatpush1.xpose.msra.mxu0 %v2017
        %2084 = vmatprep.subr.mxu0 0.0
        %2085 = vmatpush1.xpose.msra.mxu0 %v2020
        %2086 = vmatprep.mubr.f32.mxu0 0.0
        %2087 = vmatmul.mubr.f32.gmra.mrb[0].mxu0 %v1924
        %v2088 = vpop.f32.mrb[0].mxu0
        %v2089 = vadd.f32 %v1920, %v2088
        %v2090 = vpop.f32.mrb[0].mxu0
        %v2091 = vadd.f32 %v1920, %v2090
        %2092 = vdwg.mxu0
        %2093 = vst [vmem:[%s190] sm:$0xff] %v2089
        %2094 = vst [vmem:[%s190 + $0x8] sm:$0xff] %v2091
        %s2095 = sand.u32 %s115, 1
        %s2096 = scalar_lea.sflag [#allocation3], %s2095
        %s2097 = sand.u32 %s115, 1
        %s2098 = smul.addr %s2097, 16
        %s2099 = scalar_lea.vmem [#allocation2], %s2098
        // Predicated region
        $region37: #{tpu_custom_call.1} parent=35 // pred_check
          %p2100 = pneg %p125
        $region38: #{tpu_custom_call.1} parent=35 // pred_check_branch
          %2102 = sbr.rel (%p2100) target = $region40
        $region39: #{tpu_custom_call.1} parent=35 // pred_region
          %s2104 = ssub.s32 256, 256
          %2105 = vsyncadd %s2096, %s2104
          %s2106 = smul.addr %s18, 2
          %s2107 = smul.addr %s2106, 128
          %s2108 = scalar_lea.hbm %s4, %s2107
          %s2110 = sshll.u32 %s2099, 4
          %s2111 = int_to_ptr.vmem [resolvable:$true] %s2110
          %2113 = dma.vmem_to_hbm [thread:$0]  %s2111, 256, %s2108, %s2096
        $region40: #{tpu_custom_call.1} parent=35 // pred_fallthru
          _
      $region36: #{tpu_custom_call.1} parent=5 // pred_fallthru
        _
      %p2114 = scmp.le.s32.totalorder 2, %s13
      // Predicated region
      $region41: #{tpu_custom_call.1} parent=5 // pred_check
        %p2115 = pneg %p2114
      $region42: #{tpu_custom_call.1} parent=5 // pred_check_branch
        %2117 = sbr.rel (%p2115) target = $region44
      $region43: #{tpu_custom_call.1} parent=5 // pred_region
        %s2118 = ssub.s32 %s13, 2
        // Predicated region
        $region45: #{tpu_custom_call.1} parent=43 // pred_check
          %p2119 = pneg %p131
        $region46: #{tpu_custom_call.1} parent=43 // pred_check_branch
          %2121 = sbr.rel (%p2119) target = $region48
        $region47: #{tpu_custom_call.1} parent=43 // pred_region
          %s2122 = sand.u32 %s116, 1
          %s2123 = scalar_lea.sflag [#allocation3], %s2122
          %s2124 = sand.u32 %s116, 1
          %s2125 = smul.addr %s2124, 16
          %s2126 = scalar_lea.vmem [#allocation2], %s2125
          %2127 = dma.done %s2123, 256
        $region48: #{tpu_custom_call.1} parent=43 // pred_fallthru
          _
      $region44: #{tpu_custom_call.1} parent=5 // pred_fallthru
        _
    $region6: #{tpu_custom_call.1} parent=1 // loop_footer
      %s17 = sadd.s32 1, %s13
    $region7: #{tpu_custom_call.1} parent=1 // loop_footer_branch
      %12 = sbr.rel target = $region3
    $region8: #{tpu_custom_call.1} parent=1 // loop_exit
      _
    %2128 = vsyncpa [#allocation3], 1
    %s2129 = scalar_lea.sflag [#allocation3], 1
    %2130 = vsyncpa %s2129, 1

</llo_original>
